<compile_context>
chip_gen: v6e
topology: v6e:2x2x1
jax: 0.10.0
libtpu: 0.0.40
codegen_flags: <defaults>
</compile_context>

<pallas_src>
import jax
import jax.numpy as jnp
from jax.experimental import pallas as pl
from jax.experimental.pallas import tpu as pltpu

# Model dims (TitanMemoryConfig defaults).
INPUT_DIM = 64
HIDDEN_DIM = 32
MEMORY_DIM = 64
COMBINED_DIM = INPUT_DIM + MEMORY_DIM          # fc1 input  = 128 lanes
FULL_OUTPUT_DIM = INPUT_DIM + MEMORY_DIM       # fc2 output = 128 lanes
FORGET_GATE_INIT = 0.01

BATCH_TILE_MAX = 128                           # max rows per MXU pass


def _round_up(x, m):
    return (x + m - 1) // m * m


def titan_seq_kernel(keep_ref, x_ref, mem0_ref, w1_ref, b1_ref, w2_ref, b2_ref,
                     out_ref, mem_scr):
    """One (batch_block, time_step) grid point.

    keep_ref : SMEM (1,)          scalar (1 - sigmoid(forget_gate))
    x_ref    : VMEM (BM, 64)      inputs for this step / batch block
    mem0_ref : VMEM (BM, 64)      initial memory for this batch block
    w1_ref   : VMEM (128, 32)     fc1 weight (in, out)
    b1_ref   : VMEM (1, 32)       fc1 bias
    w2_ref   : VMEM (32, 128)     fc2 weight (in, out)
    b2_ref   : VMEM (1, 128)      fc2 bias
    out_ref  : VMEM (BM, 128)     full fc2 output (lane-dense store)
    mem_scr  : VMEM (BM, 64)      resident memory state across the time axis
    """
    t = pl.program_id(1)

    @pl.when(t == 0)
    def _():
        mem_scr[...] = mem0_ref[...]

    keep = keep_ref[0]                              # scalar from SMEM
    x = x_ref[...]                                  # (BM, 64)
    gated_mem = mem_scr[...] * keep                 # (BM, 64)

    # hidden = relu(fc1(concat([x, gated_memory])))  -- single 128-lane dot.
    combined = jnp.concatenate([x, gated_mem], axis=-1)          # (BM, 128)
    h = jnp.dot(combined, w1_ref[...],
                preferred_element_type=jnp.float32) + b1_ref[...]
    h = jnp.maximum(h, 0.0)                                      # (BM, 32)

    # output = fc2(hidden): [new_memory | predicted], 128 lanes wide.
    out = jnp.dot(h, w2_ref[...],
                  preferred_element_type=jnp.float32) + b2_ref[...]  # (BM, 128)

    out_ref[...] = out
    # Recurrence: memory_{t+1} = new_memory_t (as in update_memory()).
    mem_scr[...] = out[:, :MEMORY_DIM]


@jax.jit
def titan_forward_seq(fg, x_seq, memory0, w1, b1, w2, b2):
    """Fused forward over a sequence.

    Args:
      fg:       scalar forget-gate parameter.
      x_seq:    (T, B, INPUT_DIM) inputs.
      memory0:  (B, MEMORY_DIM) initial memory per sequence.
      w1,b1,w2,b2: fc1/fc2 params, (in, out) layout.

    Returns:
      predicted  (T, B, INPUT_DIM)
      new_memory (T, B, MEMORY_DIM)
      surprise   (T, B)
      final_memory (B, MEMORY_DIM)
    """
    T, B, _ = x_seq.shape

    # Pad the batch so the second-to-last block dim is sublane-friendly.
    if B <= BATCH_TILE_MAX:
        b_pad = _round_up(B, 8)
    else:
        b_pad = _round_up(B, BATCH_TILE_MAX)
    tile = min(b_pad, BATCH_TILE_MAX)
    nb = b_pad // tile

    x_p = x_seq
    m_p = memory0
    if b_pad != B:
        x_p = jnp.pad(x_seq, ((0, 0), (0, b_pad - B), (0, 0)))
        m_p = jnp.pad(memory0, ((0, b_pad - B), (0, 0)))

    # Hoisted once per call, not per time step.
    keep = (1.0 - jax.nn.sigmoid(fg)).reshape(1).astype(jnp.float32)

    const2d = lambda b, t: (0, 0)
    out_full = pl.pallas_call(
        titan_seq_kernel,
        out_shape=jax.ShapeDtypeStruct((T, b_pad, FULL_OUTPUT_DIM), jnp.float32),
        grid=(nb, T),
        in_specs=[
            pl.BlockSpec(memory_space=pltpu.MemorySpace.SMEM),                 # keep
            pl.BlockSpec((None, tile, INPUT_DIM), lambda b, t: (t, b, 0)),     # x
            pl.BlockSpec((tile, MEMORY_DIM), lambda b, t: (b, 0)),             # memory0
            pl.BlockSpec((COMBINED_DIM, HIDDEN_DIM), const2d),                 # w1
            pl.BlockSpec((1, HIDDEN_DIM), const2d),                            # b1
            pl.BlockSpec((HIDDEN_DIM, FULL_OUTPUT_DIM), const2d),              # w2
            pl.BlockSpec((1, FULL_OUTPUT_DIM), const2d),                       # b2
        ],
        out_specs=pl.BlockSpec((None, tile, FULL_OUTPUT_DIM),
                               lambda b, t: (t, b, 0)),
        scratch_shapes=[pltpu.VMEM((tile, MEMORY_DIM), jnp.float32)],
        compiler_params=pltpu.CompilerParams(
            dimension_semantics=("parallel", "arbitrary")),
    )(keep, x_p, m_p, w1, b1, w2, b2)

    out_full = out_full[:, :B, :]

    # Free slicing / elementwise in the wrapper (keeps the kernel's output
    # a single lane-dense 128-wide store).
    new_memory = out_full[..., :MEMORY_DIM]
    predicted = out_full[..., MEMORY_DIM:]
    surprise = jnp.mean((predicted - x_seq) ** 2, axis=-1)
    final_memory = new_memory[-1]
    return predicted, new_memory, surprise, final_memory


def reference_forward_seq(fg, x_seq, memory0, w1, b1, w2, b2):
    """Plain-JAX mirror of repeated TitanMemoryModel.forward + update_memory."""
    keep = 1.0 - jax.nn.sigmoid(fg)

    def step(mem, x):
        gated = mem * keep
        combined = jnp.concatenate([x, gated], axis=-1)
        hidden = jnp.maximum(combined @ w1 + b1, 0.0)
        out = hidden @ w2 + b2
        new_mem = out[:, :MEMORY_DIM]
        pred = out[:, MEMORY_DIM:]
        surprise = jnp.mean((pred - x) ** 2, axis=-1)
        return new_mem, (pred, new_mem, surprise)

    final_mem, (preds, mems, surprises) = jax.lax.scan(step, memory0, x_seq)
    return preds, mems, surprises, final_mem


def init_params(key):
    """Deterministic init matching PyTorch Linear's uniform(-1/sqrt(fan_in), +...)."""
    k1, k2, k3, k4 = jax.random.split(key, 4)
    bound1 = 1.0 / jnp.sqrt(COMBINED_DIM)
    bound2 = 1.0 / jnp.sqrt(HIDDEN_DIM)
    w1 = jax.random.uniform(k1, (COMBINED_DIM, HIDDEN_DIM), jnp.float32,
                            -bound1, bound1)
    b1 = jax.random.uniform(k2, (1, HIDDEN_DIM), jnp.float32, -bound1, bound1)
    w2 = jax.random.uniform(k3, (HIDDEN_DIM, FULL_OUTPUT_DIM), jnp.float32,
                            -bound2, bound2)
    b2 = jax.random.uniform(k4, (1, FULL_OUTPUT_DIM), jnp.float32, -bound2, bound2)
    fg = jnp.array(FORGET_GATE_INIT, dtype=jnp.float32)
    return fg, w1, b1, w2, b2


def _check(fg, x_seq, memory0, w1, b1, w2, b2):
    pred, new_mem, surprise, final_mem = titan_forward_seq(
        fg, x_seq, memory0, w1, b1, w2, b2)
    jax.block_until_ready((pred, new_mem, surprise, final_mem))

    pred_r, mem_r, sur_r, fin_r = reference_forward_seq(
        fg, x_seq, memory0, w1, b1, w2, b2)

    assert jnp.allclose(pred, pred_r, rtol=1e-4, atol=1e-4)
    assert jnp.allclose(new_mem, mem_r, rtol=1e-4, atol=1e-4)
    assert jnp.allclose(surprise, sur_r, rtol=1e-4, atol=1e-4)
    assert jnp.allclose(final_mem, fin_r, rtol=1e-4, atol=1e-4)


# TODO(synk): Adam train_step, manifold_update and JSON save/load are host-side /
# optimizer logic outside the forward pass and are not implemented as kernels.

if __name__ == "__main__":
    # Make the XLA reference matmuls full-f32 so it matches the kernel numerics.
    jax.config.update("jax_default_matmul_precision", "float32")

    key = jax.random.PRNGKey(0)
    kp, kx, km = jax.random.split(key, 3)
    fg, w1, b1, w2, b2 = init_params(kp)

    # Small shapes: 8 time steps, batch of 4 sequences (padded to 8 sublanes
    # inside the wrapper).
    T, B = 8, 4
    x_seq = jax.random.normal(kx, (T, B, INPUT_DIM), jnp.float32)
    memory0 = jax.random.normal(km, (B, MEMORY_DIM), jnp.float32)
    _check(fg, x_seq, memory0, w1, b1, w2, b2)

    # Also exercise the tiled path (2 batch blocks of 128 rows).
    T2, B2 = 8, 256
    kx2, km2 = jax.random.split(kx)
    x_seq2 = jax.random.normal(kx2, (T2, B2, INPUT_DIM), jnp.float32)
    memory02 = jax.random.normal(km2, (B2, MEMORY_DIM), jnp.float32)
    _check(fg, x_seq2, memory02, w1, b1, w2, b2)

    print("KERNEL_OK")
</pallas_src>

<mosaic_0001>
module attributes {stable_mosaic.version = 11 : i64} {
  func.func @titan_seq_kernel(%arg0: i32, %arg1: i32, %arg2: memref<1xf32, #tpu.memory_space<smem>>, %arg3: memref<1x8x64xf32, #tpu.memory_space<vmem>>, %arg4: memref<8x64xf32, #tpu.memory_space<vmem>>, %arg5: memref<128x32xf32, #tpu.memory_space<vmem>>, %arg6: memref<1x32xf32, #tpu.memory_space<vmem>>, %arg7: memref<32x128xf32, #tpu.memory_space<vmem>>, %arg8: memref<1x128xf32, #tpu.memory_space<vmem>>, %arg9: memref<1x8x128xf32, #tpu.memory_space<vmem>>, %arg10: memref<8x64xf32, #tpu.memory_space<vmem>>) attributes {dimension_semantics = [#tpu.dimension_semantics<parallel>, #tpu.dimension_semantics<arbitrary>], iteration_bounds = array<i64: 1, 8>, scalar_prefetch = 0 : i64, scratch_operands = 1 : i64, tpu.core_type = #tpu.core_type<tc>, window_params = [{transform_indices = @transform_0, window_bounds = array<i64: 1>}, {transform_indices = @transform_1, window_bounds = array<i64: 1, 8, 64>}, {transform_indices = @transform_2, window_bounds = array<i64: 8, 64>}, {pipeline_mode = #tpu.pipeline_mode<synchronous>, transform_indices = @transform_3, window_bounds = array<i64: 128, 32>}, {pipeline_mode = #tpu.pipeline_mode<synchronous>, transform_indices = @transform_4, window_bounds = array<i64: 1, 32>}, {pipeline_mode = #tpu.pipeline_mode<synchronous>, transform_indices = @transform_5, window_bounds = array<i64: 32, 128>}, {pipeline_mode = #tpu.pipeline_mode<synchronous>, transform_indices = @transform_6, window_bounds = array<i64: 1, 128>}, {transform_indices = @transform_7, window_bounds = array<i64: 1, 8, 128>}]} {
    %c0_i32 = arith.constant 0 : i32
    %0 = arith.cmpi eq, %arg1, %c0_i32 : i32
    %1 = arith.extui %0 : i1 to i32
    %c0_i32_0 = arith.constant 0 : i32
    %2 = arith.cmpi ne, %1, %c0_i32_0 : i32
    scf.if %2 {
      %c0_21 = arith.constant 0 : index
      %c0_22 = arith.constant 0 : index
      %27 = vector.load %arg4[%c0_21, %c0_22] : memref<8x64xf32, #tpu.memory_space<vmem>>, vector<8x64xf32>
      %c0_23 = arith.constant 0 : index
      %c0_24 = arith.constant 0 : index
      %28 = vector.load %arg10[%c0_23, %c0_24] : memref<8x64xf32, #tpu.memory_space<vmem>>, vector<8x64xf32>
      tpu.vector_store %arg10[%c0_23, %c0_24], %27 {strides = array<i32>} : memref<8x64xf32, #tpu.memory_space<vmem>>, vector<8x64xf32>,
    } else {
    }
    %c0 = arith.constant 0 : index
    %3 = memref.load %arg2[%c0] : memref<1xf32, #tpu.memory_space<smem>>
    %c0_1 = arith.constant 0 : index
    %c0_2 = arith.constant 0 : index
    %c0_3 = arith.constant 0 : index
    %4 = vector.load %arg3[%c0_1, %c0_2, %c0_3] : memref<1x8x64xf32, #tpu.memory_space<vmem>>, vector<1x8x64xf32>
    %5 = vector.shape_cast %4 : vector<1x8x64xf32> to vector<8x64xf32>
    %c0_4 = arith.constant 0 : index
    %c0_5 = arith.constant 0 : index
    %6 = vector.load %arg10[%c0_4, %c0_5] : memref<8x64xf32, #tpu.memory_space<vmem>>, vector<8x64xf32>
    %7 = vector.broadcast %3 : f32 to vector<8x64xf32>
    %8 = arith.mulf %6, %7 : vector<8x64xf32>
    %9 = tpu.concatenate %5, %8 in 1 : vector<8x64xf32>, vector<8x64xf32> -> vector<8x128xf32>
    %c0_6 = arith.constant 0 : index
    %c0_7 = arith.constant 0 : index
    %10 = vector.load %arg5[%c0_6, %c0_7] : memref<128x32xf32, #tpu.memory_space<vmem>>, vector<128x32xf32>
    %cst = arith.constant dense<0.000000e+00> : vector<8x32xf32>
    %11 = tpu.matmul %9, %10, %cst {dimension_numbers = #tpu.dot_dimension_numbers<[1], [0], [0], [1], [0, 0, 1, 1], [], []>, precision = #tpu.contract_precision<fp32>} : vector<8x128xf32>, vector<128x32xf32>, vector<8x32xf32> -> vector<8x32xf32>
    %c0_8 = arith.constant 0 : index
    %c0_9 = arith.constant 0 : index
    %12 = vector.load %arg6[%c0_8, %c0_9] : memref<1x32xf32, #tpu.memory_space<vmem>>, vector<1x32xf32>
    %13 = vector.broadcast %12 : vector<1x32xf32> to vector<8x32xf32>
    %14 = arith.addf %11, %13 : vector<8x32xf32>
    %cst_10 = arith.constant 0.000000e+00 : f32
    %15 = vector.broadcast %cst_10 : f32 to vector<8x32xf32>
    %16 = arith.maximumf %14, %15 : vector<8x32xf32>
    %c0_11 = arith.constant 0 : index
    %c0_12 = arith.constant 0 : index
    %17 = vector.load %arg7[%c0_11, %c0_12] : memref<32x128xf32, #tpu.memory_space<vmem>>, vector<32x128xf32>
    %cst_13 = arith.constant dense<0.000000e+00> : vector<8x128xf32>
    %18 = tpu.matmul %16, %17, %cst_13 {dimension_numbers = #tpu.dot_dimension_numbers<[1], [0], [0], [1], [0, 0, 1, 1], [], []>, precision = #tpu.contract_precision<fp32>} : vector<8x32xf32>, vector<32x128xf32>, vector<8x128xf32> -> vector<8x128xf32>
    %c0_14 = arith.constant 0 : index
    %c0_15 = arith.constant 0 : index
    %19 = vector.load %arg8[%c0_14, %c0_15] : memref<1x128xf32, #tpu.memory_space<vmem>>, vector<1x128xf32>
    %20 = vector.broadcast %19 : vector<1x128xf32> to vector<8x128xf32>
    %21 = arith.addf %18, %20 : vector<8x128xf32>
    %c0_16 = arith.constant 0 : index
    %c0_17 = arith.constant 0 : index
    %c0_18 = arith.constant 0 : index
    %22 = vector.load %arg9[%c0_16, %c0_17, %c0_18] : memref<1x8x128xf32, #tpu.memory_space<vmem>>, vector<1x8x128xf32>
    %23 = vector.shape_cast %22 : vector<1x8x128xf32> to vector<8x128xf32>
    %24 = vector.shape_cast %21 : vector<8x128xf32> to vector<1x8x128xf32>
    tpu.vector_store %arg9[%c0_16, %c0_17, %c0_18], %24 {strides = array<i32>} : memref<1x8x128xf32, #tpu.memory_space<vmem>>, vector<1x8x128xf32>,
    %25 = vector.extract_strided_slice %21 {offsets = [0, 0], sizes = [8, 64], strides = [1, 1]} : vector<8x128xf32> to vector<8x64xf32>
    %c0_19 = arith.constant 0 : index
    %c0_20 = arith.constant 0 : index
    %26 = vector.load %arg10[%c0_19, %c0_20] : memref<8x64xf32, #tpu.memory_space<vmem>>, vector<8x64xf32>
    tpu.vector_store %arg10[%c0_19, %c0_20], %25 {strides = array<i32>} : memref<8x64xf32, #tpu.memory_space<vmem>>, vector<8x64xf32>,
    return
  }
  func.func @transform_0(%arg0: i32, %arg1: i32) -> i32 {
    %c0_i32 = arith.constant 0 : i32
    %c0_i32_0 = arith.constant 0 : i32
    return %c0_i32 : i32
  }
  func.func @transform_1(%arg0: i32, %arg1: i32) -> (i32, i32, i32) {
    %c0_i32 = arith.constant 0 : i32
    %c0_i32_0 = arith.constant 0 : i32
    return %arg1, %arg0, %c0_i32 : i32, i32, i32
  }
  func.func @transform_2(%arg0: i32, %arg1: i32) -> (i32, i32) {
    %c0_i32 = arith.constant 0 : i32
    %c0_i32_0 = arith.constant 0 : i32
    return %arg0, %c0_i32 : i32, i32
  }
  func.func @transform_3(%arg0: i32, %arg1: i32) -> (i32, i32) {
    %c0_i32 = arith.constant 0 : i32
    %c0_i32_0 = arith.constant 0 : i32
    %c0_i32_1 = arith.constant 0 : i32
    return %c0_i32, %c0_i32_0 : i32, i32
  }
  func.func @transform_4(%arg0: i32, %arg1: i32) -> (i32, i32) {
    %c0_i32 = arith.constant 0 : i32
    %c0_i32_0 = arith.constant 0 : i32
    %c0_i32_1 = arith.constant 0 : i32
    return %c0_i32, %c0_i32_0 : i32, i32
  }
  func.func @transform_5(%arg0: i32, %arg1: i32) -> (i32, i32) {
    %c0_i32 = arith.constant 0 : i32
    %c0_i32_0 = arith.constant 0 : i32
    %c0_i32_1 = arith.constant 0 : i32
    return %c0_i32, %c0_i32_0 : i32, i32
  }
  func.func @transform_6(%arg0: i32, %arg1: i32) -> (i32, i32) {
    %c0_i32 = arith.constant 0 : i32
    %c0_i32_0 = arith.constant 0 : i32
    %c0_i32_1 = arith.constant 0 : i32
    return %c0_i32, %c0_i32_0 : i32, i32
  }
  func.func @transform_7(%arg0: i32, %arg1: i32) -> (i32, i32, i32) {
    %c0_i32 = arith.constant 0 : i32
    %c0_i32_0 = arith.constant 0 : i32
    return %arg1, %arg0, %c0_i32 : i32, i32, i32
  }
}

</mosaic_0001>

<llo_original>
// kernel: titan_forward_seq.1
$region0: #{titan_forward_seq.1}
  #allocation0 [shape = 'u32[]', space=smem, size = 0x4, offset = 0x4, fixed_abs, tag = 'smem constant byte address 0x4 - core index']
  #allocation1 [shape = 'u32[144,128]{1,0:T(1,128)}', space=vmem, size = 0x12000, scoped, tag = 'internal scratch']
  #allocation2 [shape = 'f32[8,64]{1,0:T(8,128)}', space=vmem, size = 0x1000, scoped, tag = 'scratch operand']
  #allocation3 [shape = 'f32[1]{0:T(128)S(6)}', space=smem, size = 0x200, scoped, tag = 'scoped memory for titan_forward_seq.1']
  %s0 = inlined_call_operand.<no memory space> [shape: f32[1], index: 0, kind: input, shape index: {}]
  %s1 = inlined_call_operand.vmem [shape: f32[8,8,64], index: 1, kind: input, shape index: {}]
  %s2 = inlined_call_operand.vmem [shape: f32[8,64], index: 2, kind: input, shape index: {}]
  %s3 = inlined_call_operand.vmem [shape: f32[128,32], index: 3, kind: input, shape index: {}]
  %s4 = inlined_call_operand.vmem [shape: f32[1,32], index: 4, kind: input, shape index: {}]
  %s5 = inlined_call_operand.vmem [shape: f32[32,128], index: 5, kind: input, shape index: {}]
  %s6 = inlined_call_operand.vmem [shape: f32[1,128], index: 6, kind: input, shape index: {}]
  %s7 = inlined_call_operand.vmem [shape: f32[8,8,128], index: 7, kind: output, shape index: {}]
  %s8 = sld [smem:[#allocation0]]
  $region65: #{titan_forward_seq.1} parent=0
    _
  %s10 = ssub.s32 1, %s8
  %s11 = scalar_select 0, %s10, %s8
  %12 = sst [smem:[#allocation3]] %s0
  loop: start=0, step=1, limit=10
  $region2: #{titan_forward_seq.1} parent=0 // loop_pre_header
    _
  $region3: #{titan_forward_seq.1} parent=0 // loop_header
    %s14 = sphi 0, %s18
    %p15 = scmp.ge.s32.totalorder %s14, 10
    %s21 = sphi 0, %s33
    %s22 = sphi 0, %s29
    %s23 = sphi 0, %s21
    %s24 = sphi 0, %s22
    %s25 = sphi 0, %s23
    %s26 = sphi 0, %s24
    %s34 = sphi 0, %s34
    %s36 = sphi 0, %s34
    %s37 = sphi 0, %s36
    %s51 = sphi 0, %s37
    %s59 = sphi 0, %s61
    %s62 = sphi 0, %s59
    %s63 = sphi 0, %s62
    %s79 = sphi 0, %s63
    %s85 = sphi 0, %s87
    %s88 = sphi 0, %s85
    %s89 = sphi 0, %s88
    %s105 = sphi 0, %s89
    %s109 = sphi 0, %s109
    %s111 = sphi 0, %s109
    %s112 = sphi 0, %s111
    %s126 = sphi 0, %s112
    %s130 = sphi 0, %s130
    %s132 = sphi 0, %s130
    %s133 = sphi 0, %s132
    %s147 = sphi 0, %s133
    %s151 = sphi 0, %s151
    %s153 = sphi 0, %s151
    %s154 = sphi 0, %s153
    %s168 = sphi 0, %s154
    %s172 = sphi 0, %s172
    %s174 = sphi 0, %s172
    %s175 = sphi 0, %s174
    %s189 = sphi 0, %s175
    %s197 = sphi 0, %s199
    %s200 = sphi 0, %s197
    %s201 = sphi 0, %s200
    %s217 = sphi 0, %s201
  $region4: #{titan_forward_seq.1} parent=0 // loop_header_branch
    %17 = sbr.rel (%p15) target = $region8
  $region5: #{titan_forward_seq.1} parent=0 // loop_body
    %s19 = ssub.s32 %s14, 1
    %s20 = ssub.s32 %s14, 2
    %s27 = sadd.s32 1, %s22
    %p28 = scmp.ge.s32.totalorder %s27, 8
    %s29 = scalar_select %p28, 0, %s27
    %s30 = sadd.s32 1, %s21
    %s31 = scalar_select %p28, %s30, %s21
    %p32 = scmp.ge.s32.totalorder %s31, 1
    %s33 = scalar_select %p32, 0, %s31
    %s35 = sadd.s32 %s34, 1
    %p38 = scmp.eq.s32.totalorder %s14, 7
    %p39 = scmp.ne.s32.totalorder %s34, %s36
    %p40 = scmp.eq.s32.totalorder %s14, 0
    %p41 = por %p39, %p40
    %p42 = scmp.ne.s32.totalorder %s34, %s36
    %p43 = scmp.eq.s32.totalorder %s19, 7
    %p44 = por %p42, %p43
    %p45 = scmp.ne.s32.totalorder %s36, %s37
    %p46 = scmp.eq.s32.totalorder %s19, 0
    %p47 = por %p45, %p46
    %p48 = scmp.ne.s32.totalorder %s36, %s37
    %p49 = scmp.eq.s32.totalorder %s20, 7
    %p50 = por %p48, %p49
    %p52 = scmp.ne.s32.totalorder %s37, %s51
    %p53 = scmp.eq.s32.totalorder %s20, 0
    %p54 = por %p52, %p53
    %s55 = ssub.s32 %s22, %s29
    %s56 = ssub.s32 %s21, %s33
    %s57 = sor.u32 %s55, %s56
    %p58 = scmp.eq.s32.totalorder %s57, 0
    %s60 = sadd.s32 %s59, 1
    %s61 = scalar_select %p58, %s59, %s60
    %p64 = pneg %p58
    %p65 = scmp.eq.s32.totalorder %s14, 7
    %p66 = por %p64, %p65
    %p67 = scmp.ne.s32.totalorder %s59, %s62
    %p68 = scmp.eq.s32.totalorder %s14, 0
    %p69 = por %p67, %p68
    %p70 = scmp.ne.s32.totalorder %s59, %s62
    %p71 = scmp.eq.s32.totalorder %s19, 7
    %p72 = por %p70, %p71
    %p73 = scmp.ne.s32.totalorder %s62, %s63
    %p74 = scmp.eq.s32.totalorder %s19, 0
    %p75 = por %p73, %p74
    %p76 = scmp.ne.s32.totalorder %s62, %s63
    %p77 = scmp.eq.s32.totalorder %s20, 7
    %p78 = por %p76, %p77
    %p80 = scmp.ne.s32.totalorder %s63, %s79
    %p81 = scmp.eq.s32.totalorder %s20, 0
    %p82 = por %p80, %p81
    %s83 = ssub.s32 %s21, %s33
    %p84 = scmp.eq.s32.totalorder %s83, 0
    %s86 = sadd.s32 %s85, 1
    %s87 = scalar_select %p84, %s85, %s86
    %p90 = pneg %p84
    %p91 = scmp.eq.s32.totalorder %s14, 7
    %p92 = por %p90, %p91
    %p93 = scmp.ne.s32.totalorder %s85, %s88
    %p94 = scmp.eq.s32.totalorder %s14, 0
    %p95 = por %p93, %p94
    %p96 = scmp.ne.s32.totalorder %s85, %s88
    %p97 = scmp.eq.s32.totalorder %s19, 7
    %p98 = por %p96, %p97
    %p99 = scmp.ne.s32.totalorder %s88, %s89
    %p100 = scmp.eq.s32.totalorder %s19, 0
    %p101 = por %p99, %p100
    %p102 = scmp.ne.s32.totalorder %s88, %s89
    %p103 = scmp.eq.s32.totalorder %s20, 7
    %p104 = por %p102, %p103
    %p106 = scmp.ne.s32.totalorder %s89, %s105
    %p107 = scmp.eq.s32.totalorder %s20, 0
    %p108 = por %p106, %p107
    %s110 = sadd.s32 %s109, 1
    %p113 = scmp.eq.s32.totalorder %s14, 7
    %p114 = scmp.ne.s32.totalorder %s109, %s111
    %p115 = scmp.eq.s32.totalorder %s14, 0
    %p116 = por %p114, %p115
    %p117 = scmp.ne.s32.totalorder %s109, %s111
    %p118 = scmp.eq.s32.totalorder %s19, 7
    %p119 = por %p117, %p118
    %p120 = scmp.ne.s32.totalorder %s111, %s112
    %p121 = scmp.eq.s32.totalorder %s19, 0
    %p122 = por %p120, %p121
    %p123 = scmp.ne.s32.totalorder %s111, %s112
    %p124 = scmp.eq.s32.totalorder %s20, 7
    %p125 = por %p123, %p124
    %p127 = scmp.ne.s32.totalorder %s112, %s126
    %p128 = scmp.eq.s32.totalorder %s20, 0
    %p129 = por %p127, %p128
    %s131 = sadd.s32 %s130, 1
    %p134 = scmp.eq.s32.totalorder %s14, 7
    %p135 = scmp.ne.s32.totalorder %s130, %s132
    %p136 = scmp.eq.s32.totalorder %s14, 0
    %p137 = por %p135, %p136
    %p138 = scmp.ne.s32.totalorder %s130, %s132
    %p139 = scmp.eq.s32.totalorder %s19, 7
    %p140 = por %p138, %p139
    %p141 = scmp.ne.s32.totalorder %s132, %s133
    %p142 = scmp.eq.s32.totalorder %s19, 0
    %p143 = por %p141, %p142
    %p144 = scmp.ne.s32.totalorder %s132, %s133
    %p145 = scmp.eq.s32.totalorder %s20, 7
    %p146 = por %p144, %p145
    %p148 = scmp.ne.s32.totalorder %s133, %s147
    %p149 = scmp.eq.s32.totalorder %s20, 0
    %p150 = por %p148, %p149
    %s152 = sadd.s32 %s151, 1
    %p155 = scmp.eq.s32.totalorder %s14, 7
    %p156 = scmp.ne.s32.totalorder %s151, %s153
    %p157 = scmp.eq.s32.totalorder %s14, 0
    %p158 = por %p156, %p157
    %p159 = scmp.ne.s32.totalorder %s151, %s153
    %p160 = scmp.eq.s32.totalorder %s19, 7
    %p161 = por %p159, %p160
    %p162 = scmp.ne.s32.totalorder %s153, %s154
    %p163 = scmp.eq.s32.totalorder %s19, 0
    %p164 = por %p162, %p163
    %p165 = scmp.ne.s32.totalorder %s153, %s154
    %p166 = scmp.eq.s32.totalorder %s20, 7
    %p167 = por %p165, %p166
    %p169 = scmp.ne.s32.totalorder %s154, %s168
    %p170 = scmp.eq.s32.totalorder %s20, 0
    %p171 = por %p169, %p170
    %s173 = sadd.s32 %s172, 1
    %p176 = scmp.eq.s32.totalorder %s14, 7
    %p177 = scmp.ne.s32.totalorder %s172, %s174
    %p178 = scmp.eq.s32.totalorder %s14, 0
    %p179 = por %p177, %p178
    %p180 = scmp.ne.s32.totalorder %s172, %s174
    %p181 = scmp.eq.s32.totalorder %s19, 7
    %p182 = por %p180, %p181
    %p183 = scmp.ne.s32.totalorder %s174, %s175
    %p184 = scmp.eq.s32.totalorder %s19, 0
    %p185 = por %p183, %p184
    %p186 = scmp.ne.s32.totalorder %s174, %s175
    %p187 = scmp.eq.s32.totalorder %s20, 7
    %p188 = por %p186, %p187
    %p190 = scmp.ne.s32.totalorder %s175, %s189
    %p191 = scmp.eq.s32.totalorder %s20, 0
    %p192 = por %p190, %p191
    %s193 = ssub.s32 %s22, %s29
    %s194 = ssub.s32 %s21, %s33
    %s195 = sor.u32 %s193, %s194
    %p196 = scmp.eq.s32.totalorder %s195, 0
    %s198 = sadd.s32 %s197, 1
    %s199 = scalar_select %p196, %s197, %s198
    %p202 = pneg %p196
    %p203 = scmp.eq.s32.totalorder %s14, 7
    %p204 = por %p202, %p203
    %p205 = scmp.ne.s32.totalorder %s197, %s200
    %p206 = scmp.eq.s32.totalorder %s14, 0
    %p207 = por %p205, %p206
    %p208 = scmp.ne.s32.totalorder %s197, %s200
    %p209 = scmp.eq.s32.totalorder %s19, 7
    %p210 = por %p208, %p209
    %p211 = scmp.ne.s32.totalorder %s200, %s201
    %p212 = scmp.eq.s32.totalorder %s19, 0
    %p213 = por %p211, %p212
    %p214 = scmp.ne.s32.totalorder %s200, %s201
    %p215 = scmp.eq.s32.totalorder %s20, 7
    %p216 = por %p214, %p215
    %p218 = scmp.ne.s32.totalorder %s201, %s217
    %p219 = scmp.eq.s32.totalorder %s20, 0
    %p220 = por %p218, %p219
    %p221 = scmp.le.s32.totalorder 1, %s14
    %p222 = scmp.lt.s32.totalorder %s14, 9
    %p223 = pnand %p221, %p222
    %p224 = pneg %p223
    // Predicated region
    $region9: #{titan_forward_seq.1} parent=5 // pred_check
      _
    $region10: #{titan_forward_seq.1} parent=5 // pred_check_branch
      %226 = sbr.rel (%p223) target = $region12
    $region11: #{titan_forward_seq.1} parent=5 // pred_region
      %s227 = ssub.s32 %s14, 1
      // Predicated region
      $region13: #{titan_forward_seq.1} parent=11 // pred_check
        %p228 = pneg %p47
      $region14: #{titan_forward_seq.1} parent=11 // pred_check_branch
        %230 = sbr.rel (%p228) target = $region16
      $region15: #{titan_forward_seq.1} parent=11 // pred_region
        _
      $region16: #{titan_forward_seq.1} parent=11 // pred_fallthru
        _
      // Predicated region
      $region17: #{titan_forward_seq.1} parent=11 // pred_check
        %p231 = pneg %p101
      $region18: #{titan_forward_seq.1} parent=11 // pred_check_branch
        %233 = sbr.rel (%p231) target = $region20
      $region19: #{titan_forward_seq.1} parent=11 // pred_region
        %p234 = scmp.lt.s32.totalorder %s23, 0
        %s235 = scalar_select %p234, %s23, 0
        %s236 = smul.addr %s235, 8
        %s237 = scalar_lea.vmem %s2, %s236
      $region20: #{titan_forward_seq.1} parent=11 // pred_fallthru
        _
      // Predicated region
      $region21: #{titan_forward_seq.1} parent=11 // pred_check
        %p238 = pneg %p122
      $region22: #{titan_forward_seq.1} parent=11 // pred_check_branch
        %240 = sbr.rel (%p238) target = $region24
      $region23: #{titan_forward_seq.1} parent=11 // pred_region
        _
      $region24: #{titan_forward_seq.1} parent=11 // pred_fallthru
        _
      // Predicated region
      $region25: #{titan_forward_seq.1} parent=11 // pred_check
        %p241 = pneg %p143
      $region26: #{titan_forward_seq.1} parent=11 // pred_check_branch
        %243 = sbr.rel (%p241) target = $region28
      $region27: #{titan_forward_seq.1} parent=11 // pred_region
        _
      $region28: #{titan_forward_seq.1} parent=11 // pred_fallthru
        _
      // Predicated region
      $region29: #{titan_forward_seq.1} parent=11 // pred_check
        %p244 = pneg %p164
      $region30: #{titan_forward_seq.1} parent=11 // pred_check_branch
        %246 = sbr.rel (%p244) target = $region32
      $region31: #{titan_forward_seq.1} parent=11 // pred_region
        _
      $region32: #{titan_forward_seq.1} parent=11 // pred_fallthru
        _
      // Predicated region
      $region33: #{titan_forward_seq.1} parent=11 // pred_check
        %p247 = pneg %p185
      $region34: #{titan_forward_seq.1} parent=11 // pred_check_branch
        %249 = sbr.rel (%p247) target = $region36
      $region35: #{titan_forward_seq.1} parent=11 // pred_region
        _
      $region36: #{titan_forward_seq.1} parent=11 // pred_fallthru
        _
    $region12: #{titan_forward_seq.1} parent=5 // pred_fallthru
      _
    %p250 = scmp.lt.s32.totalorder %s14, 8
    // Predicated region
    $region37: #{titan_forward_seq.1} parent=5 // pred_check
      %p251 = pneg %p250
    $region38: #{titan_forward_seq.1} parent=5 // pred_check_branch
      %253 = sbr.rel (%p251) target = $region40
    $region39: #{titan_forward_seq.1} parent=5 // pred_region
      // Predicated region
      $region41: #{titan_forward_seq.1} parent=39 // pred_check
        %p254 = pneg %p69
      $region42: #{titan_forward_seq.1} parent=39 // pred_check_branch
        %256 = sbr.rel (%p254) target = $region44
      $region43: #{titan_forward_seq.1} parent=39 // pred_region
        %p257 = scmp.lt.s32.totalorder %s22, 7
        %s258 = scalar_select %p257, %s22, 7
        %p259 = scmp.lt.s32.totalorder %s21, 0
        %s260 = scalar_select %p259, %s21, 0
        %s261 = sadd.s32 %s260, %s258
        %s262 = smul.addr %s261, 8
        %s263 = scalar_lea.vmem %s1, %s262
      $region44: #{titan_forward_seq.1} parent=39 // pred_fallthru
        _
    $region40: #{titan_forward_seq.1} parent=5 // pred_fallthru
      _
    %p264 = scmp.le.s32.totalorder 1, %s14
    %p265 = scmp.lt.s32.totalorder %s14, 9
    %p266 = pnand %p264, %p265
    %p267 = pneg %p266
    // Predicated region
    $region45: #{titan_forward_seq.1} parent=5 // pred_check
      _
    $region46: #{titan_forward_seq.1} parent=5 // pred_check_branch
      %269 = sbr.rel (%p266) target = $region48
    $region47: #{titan_forward_seq.1} parent=5 // pred_region
      %s270 = ssub.s32 %s14, 1
      %p271 = pneg %p47
      %p272 = pneg %p44
      %p273 = scmp.lt.s32.totalorder %s24, 7
      %s274 = scalar_select %p273, %s24, 7
      %p275 = scmp.lt.s32.totalorder %s23, 0
      %s276 = scalar_select %p275, %s23, 0
      %s277 = sadd.s32 %s276, %s274
      %s278 = smul.addr %s277, 8
      %s279 = scalar_lea.vmem %s1, %s278
      %p280 = pneg %p75
      %p281 = pneg %p72
      %p282 = scmp.lt.s32.totalorder %s23, 0
      %s283 = scalar_select %p282, %s23, 0
      %s284 = smul.addr %s283, 8
      %s285 = scalar_lea.vmem %s2, %s284
      %p286 = pneg %p101
      %p287 = pneg %p98
      %p288 = pneg %p122
      %p289 = pneg %p119
      %p290 = pneg %p143
      %p291 = pneg %p140
      %p292 = pneg %p164
      %p293 = pneg %p161
      %p294 = pneg %p185
      %p295 = pneg %p182
      %p296 = pneg %p213
      %p297 = pneg %p210
      %p298 = scmp.lt.s32.totalorder %s24, 7
      %s299 = scalar_select %p298, %s24, 7
      %p300 = scmp.lt.s32.totalorder %s23, 0
      %s301 = scalar_select %p300, %s23, 0
      %s302 = sadd.s32 %s301, %s299
      %s303 = smul.addr %s302, 8
      %s304 = scalar_lea.vmem %s7, %s303
      %p305 = scmp.lt.s32.totalorder %s24, 7
      %s306 = scalar_select %p305, %s24, 7
      %p307 = scmp.lt.s32.totalorder %s23, 0
      %s308 = scalar_select %p307, %s23, 0
      %s309 = sadd.s32 %s308, %s306
      %s310 = smul.addr %s309, 8
      %s311 = scalar_lea.vmem %s1, %s310
      %p312 = scmp.lt.s32.totalorder %s23, 0
      %s313 = scalar_select %p312, %s23, 0
      %s314 = smul.addr %s313, 8
      %s315 = scalar_lea.vmem %s2, %s314
      %p316 = scmp.lt.s32.totalorder %s24, 7
      %s317 = scalar_select %p316, %s24, 7
      %p318 = scmp.lt.s32.totalorder %s23, 0
      %s319 = scalar_select %p318, %s23, 0
      %s320 = sadd.s32 %s319, %s317
      %s321 = smul.addr %s320, 8
      %s322 = scalar_lea.vmem %s7, %s321
      %p323 = scmp.eq.s32.totalorder %s24, 0
      // Predicated region
      $region49: #{titan_forward_seq.1} parent=47 // pred_check
        %p324 = pneg %p323
      $region50: #{titan_forward_seq.1} parent=47 // pred_check_branch
        %326 = sbr.rel (%p324) target = $region52
      $region51: #{titan_forward_seq.1} parent=47 // pred_region
        %v327 = vld [vmem:[%s315] sm:$0xff]
        %vm328 = vcmask 523264
        %329 = vst.msk [vmem:[#allocation2] sm:$0xff] %vm328, %v327
      $region52: #{titan_forward_seq.1} parent=47 // pred_fallthru
        _
      %s330 = sld [smem:[#allocation3]]
      %v331 = vld [vmem:[%s311] sm:$0xff]
      %v332 = vld [vmem:[#allocation2] sm:$0xff]
      %v333 = vstv %s330
      %v334 = vmul.f32 %v332, %v333
      %336 = vrot.lane.b32.xlu0 %v334, 64
      %v337 = vpop.permute.xlu0 %336
      %vm339 = vcmask 523264
      %v340 = vsel %vm339, %v331, %v337
      %v341 = vld [vmem:[%s3] sm:$0xff]
      %v342 = vld [vmem:[%s3 + $0x8] sm:$0xff]
      %v343 = vld [vmem:[%s3 + $0x10] sm:$0xff]
      %v344 = vld [vmem:[%s3 + $0x18] sm:$0xff]
      %v345 = vld [vmem:[%s3 + $0x20] sm:$0xff]
      %v346 = vld [vmem:[%s3 + $0x28] sm:$0xff]
      %v347 = vld [vmem:[%s3 + $0x30] sm:$0xff]
      %v348 = vld [vmem:[%s3 + $0x38] sm:$0xff]
      %v349 = vld [vmem:[%s3 + $0x40] sm:$0xff]
      %v350 = vld [vmem:[%s3 + $0x48] sm:$0xff]
      %v351 = vld [vmem:[%s3 + $0x50] sm:$0xff]
      %v352 = vld [vmem:[%s3 + $0x58] sm:$0xff]
      %v353 = vld [vmem:[%s3 + $0x60] sm:$0xff]
      %v354 = vld [vmem:[%s3 + $0x68] sm:$0xff]
      %v355 = vld [vmem:[%s3 + $0x70] sm:$0xff]
      %v356 = vld [vmem:[%s3 + $0x78] sm:$0xff]
      %v357 = vld [vmem:[%s4] sm:$0x1]
      %v359 = vlaneseq
      %v360 = vshrl.u32 %v359, 7
      %v361 = vsub.s32 0, %v360
      %v362 = vrot.slane %v357, %v361
      %364 = vmatprep.subr.mxu0 0.0
      %v365 = vand.u32 %v356, 4294901760
      %366 = vmatpush1.msra.mxu0 %v365
      %367 = vmatprep.subr.mxu0 0.0
      %v368 = vand.u32 %v355, 4294901760
      %369 = vmatpush1.msra.mxu0 %v368
      %370 = vmatprep.subr.mxu0 0.0
      %v371 = vand.u32 %v354, 4294901760
      %372 = vmatpush1.msra.mxu0 %v371
      %373 = vmatprep.subr.mxu0 0.0
      %v374 = vand.u32 %v353, 4294901760
      %375 = vmatpush1.msra.mxu0 %v374
      %376 = vmatprep.subr.mxu0 0.0
      %v377 = vand.u32 %v352, 4294901760
      %378 = vmatpush1.msra.mxu0 %v377
      %379 = vmatprep.subr.mxu0 0.0
      %v380 = vand.u32 %v351, 4294901760
      %381 = vmatpush1.msra.mxu0 %v380
      %382 = vmatprep.subr.mxu0 0.0
      %v383 = vand.u32 %v350, 4294901760
      %384 = vmatpush1.msra.mxu0 %v383
      %385 = vmatprep.subr.mxu0 0.0
      %v386 = vand.u32 %v349, 4294901760
      %387 = vmatpush1.msra.mxu0 %v386
      %388 = vmatprep.subr.mxu0 0.0
      %v389 = vand.u32 %v348, 4294901760
      %390 = vmatpush1.msra.mxu0 %v389
      %391 = vmatprep.subr.mxu0 0.0
      %v392 = vand.u32 %v347, 4294901760
      %393 = vmatpush1.msra.mxu0 %v392
      %394 = vmatprep.subr.mxu0 0.0
      %v395 = vand.u32 %v346, 4294901760
      %396 = vmatpush1.msra.mxu0 %v395
      %397 = vmatprep.subr.mxu0 0.0
      %v398 = vand.u32 %v345, 4294901760
      %399 = vmatpush1.msra.mxu0 %v398
      %400 = vmatprep.subr.mxu0 0.0
      %v401 = vand.u32 %v344, 4294901760
      %402 = vmatpush1.msra.mxu0 %v401
      %403 = vmatprep.subr.mxu0 0.0
      %v404 = vand.u32 %v343, 4294901760
      %405 = vmatpush1.msra.mxu0 %v404
      %406 = vmatprep.subr.mxu0 0.0
      %v407 = vand.u32 %v342, 4294901760
      %408 = vmatpush1.msra.mxu0 %v407
      %409 = vmatprep.subr.mxu0 0.0
      %v410 = vand.u32 %v341, 4294901760
      %411 = vmatpush1.msra.mxu0 %v410
      %412 = vmatprep.subr.mxu0 0.0
      %413 = vmatpush2.msra.mxu0 0.0
      %414 = vmatprep.subr.mxu0 0.0
      %415 = vmatpush2.msra.mxu0 0.0
      %416 = vmatprep.subr.mxu0 0.0
      %417 = vmatpush2.msra.mxu0 0.0
      %418 = vmatprep.subr.mxu0 0.0
      %419 = vmatpush2.msra.mxu0 0.0
      %420 = vmatprep.subr.mxu0 0.0
      %421 = vmatpush2.msra.mxu0 0.0
      %422 = vmatprep.subr.mxu0 0.0
      %423 = vmatpush2.msra.mxu0 0.0
      %424 = vmatprep.subr.mxu0 0.0
      %425 = vmatpush2.msra.mxu0 0.0
      %426 = vmatprep.subr.mxu0 0.0
      %427 = vmatpush2.msra.mxu0 0.0
      %428 = vmatprep.subr.mxu0 0.0
      %429 = vmatpush2.msra.mxu0 0.0
      %430 = vmatprep.subr.mxu0 0.0
      %431 = vmatpush2.msra.mxu0 0.0
      %432 = vmatprep.subr.mxu0 0.0
      %433 = vmatpush2.msra.mxu0 0.0
      %434 = vmatprep.subr.mxu0 0.0
      %435 = vmatpush2.msra.mxu0 0.0
      %436 = vmatprep.subr.mxu0 0.0
      %437 = vmatpush2.msra.mxu0 0.0
      %438 = vmatprep.subr.mxu0 0.0
      %439 = vmatpush2.msra.mxu0 0.0
      %440 = vmatprep.subr.mxu0 0.0
      %441 = vmatpush2.msra.mxu0 0.0
      %442 = vmatprep.subr.mxu0 0.0
      %443 = vmatpush2.msra.mxu0 0.0
      %444 = vmatprep.mubr.f32.mxu0 0.0
      %v445 = vand.u32 %v340, 4294901760
      %v446 = vsub.f32 %v340, %v445
      %v447 = vand.u32 %v446, 4294901760
      %v448 = vsub.f32 %v446, %v447
      %v449 = vand.u32 %v448, 4294901760
      %450 = vmatmul.mubr.f32.gmra.mxu0 %v449
      %v451 = vpop.f32.mrf.mxu0
      %v452 = vadd.f32 %v362, %v451
      %v453 = vpop.f32.mrf.mxu0
      %454 = vdwg.mxu0
      %455 = vmatprep.subr.mxu0 0.0
      %v456 = vand.u32 %v356, 4294901760
      %v457 = vsub.f32 %v356, %v456
      %v458 = vand.u32 %v457, 4294901760
      %v459 = vsub.f32 %v457, %v458
      %v460 = vand.u32 %v459, 4294901760
      %461 = vmatpush1.msra.mxu0 %v460
      %462 = vmatprep.subr.mxu0 0.0
      %v463 = vand.u32 %v355, 4294901760
      %v464 = vsub.f32 %v355, %v463
      %v465 = vand.u32 %v464, 4294901760
      %v466 = vsub.f32 %v464, %v465
      %v467 = vand.u32 %v466, 4294901760
      %468 = vmatpush1.msra.mxu0 %v467
      %469 = vmatprep.subr.mxu0 0.0
      %v470 = vand.u32 %v354, 4294901760
      %v471 = vsub.f32 %v354, %v470
      %v472 = vand.u32 %v471, 4294901760
      %v473 = vsub.f32 %v471, %v472
      %v474 = vand.u32 %v473, 4294901760
      %475 = vmatpush1.msra.mxu0 %v474
      %476 = vmatprep.subr.mxu0 0.0
      %v477 = vand.u32 %v353, 4294901760
      %v478 = vsub.f32 %v353, %v477
      %v479 = vand.u32 %v478, 4294901760
      %v480 = vsub.f32 %v478, %v479
      %v481 = vand.u32 %v480, 4294901760
      %482 = vmatpush1.msra.mxu0 %v481
      %483 = vmatprep.subr.mxu0 0.0
      %v484 = vand.u32 %v352, 4294901760
      %v485 = vsub.f32 %v352, %v484
      %v486 = vand.u32 %v485, 4294901760
      %v487 = vsub.f32 %v485, %v486
      %v488 = vand.u32 %v487, 4294901760
      %489 = vmatpush1.msra.mxu0 %v488
      %490 = vmatprep.subr.mxu0 0.0
      %v491 = vand.u32 %v351, 4294901760
      %v492 = vsub.f32 %v351, %v491
      %v493 = vand.u32 %v492, 4294901760
      %v494 = vsub.f32 %v492, %v493
      %v495 = vand.u32 %v494, 4294901760
      %496 = vmatpush1.msra.mxu0 %v495
      %497 = vmatprep.subr.mxu0 0.0
      %v498 = vand.u32 %v350, 4294901760
      %v499 = vsub.f32 %v350, %v498
      %v500 = vand.u32 %v499, 4294901760
      %v501 = vsub.f32 %v499, %v500
      %v502 = vand.u32 %v501, 4294901760
      %503 = vmatpush1.msra.mxu0 %v502
      %504 = vmatprep.subr.mxu0 0.0
      %v505 = vand.u32 %v349, 4294901760
      %v506 = vsub.f32 %v349, %v505
      %v507 = vand.u32 %v506, 4294901760
      %v508 = vsub.f32 %v506, %v507
      %v509 = vand.u32 %v508, 4294901760
      %510 = vmatpush1.msra.mxu0 %v509
      %511 = vmatprep.subr.mxu0 0.0
      %v512 = vand.u32 %v348, 4294901760
      %v513 = vsub.f32 %v348, %v512
      %v514 = vand.u32 %v513, 4294901760
      %v515 = vsub.f32 %v513, %v514
      %v516 = vand.u32 %v515, 4294901760
      %517 = vmatpush1.msra.mxu0 %v516
      %518 = vmatprep.subr.mxu0 0.0
      %v519 = vand.u32 %v347, 4294901760
      %v520 = vsub.f32 %v347, %v519
      %v521 = vand.u32 %v520, 4294901760
      %v522 = vsub.f32 %v520, %v521
      %v523 = vand.u32 %v522, 4294901760
      %524 = vmatpush1.msra.mxu0 %v523
      %525 = vmatprep.subr.mxu0 0.0
      %v526 = vand.u32 %v346, 4294901760
      %v527 = vsub.f32 %v346, %v526
      %v528 = vand.u32 %v527, 4294901760
      %v529 = vsub.f32 %v527, %v528
      %v530 = vand.u32 %v529, 4294901760
      %531 = vmatpush1.msra.mxu0 %v530
      %532 = vmatprep.subr.mxu0 0.0
      %v533 = vand.u32 %v345, 4294901760
      %v534 = vsub.f32 %v345, %v533
      %v535 = vand.u32 %v534, 4294901760
      %v536 = vsub.f32 %v534, %v535
      %v537 = vand.u32 %v536, 4294901760
      %538 = vmatpush1.msra.mxu0 %v537
      %539 = vmatprep.subr.mxu0 0.0
      %v540 = vand.u32 %v344, 4294901760
      %v541 = vsub.f32 %v344, %v540
      %v542 = vand.u32 %v541, 4294901760
      %v543 = vsub.f32 %v541, %v542
      %v544 = vand.u32 %v543, 4294901760
      %545 = vmatpush1.msra.mxu0 %v544
      %546 = vmatprep.subr.mxu0 0.0
      %v547 = vand.u32 %v343, 4294901760
      %v548 = vsub.f32 %v343, %v547
      %v549 = vand.u32 %v548, 4294901760
      %v550 = vsub.f32 %v548, %v549
      %v551 = vand.u32 %v550, 4294901760
      %552 = vmatpush1.msra.mxu0 %v551
      %553 = vmatprep.subr.mxu0 0.0
      %v554 = vand.u32 %v342, 4294901760
      %v555 = vsub.f32 %v342, %v554
      %v556 = vand.u32 %v555, 4294901760
      %v557 = vsub.f32 %v555, %v556
      %v558 = vand.u32 %v557, 4294901760
      %559 = vmatpush1.msra.mxu0 %v558
      %560 = vmatprep.subr.mxu0 0.0
      %v561 = vand.u32 %v341, 4294901760
      %v562 = vsub.f32 %v341, %v561
      %v563 = vand.u32 %v562, 4294901760
      %v564 = vsub.f32 %v562, %v563
      %v565 = vand.u32 %v564, 4294901760
      %566 = vmatpush1.msra.mxu0 %v565
      %567 = vmatprep.subr.mxu0 0.0
      %568 = vmatpush2.msra.mxu0 0.0
      %569 = vmatprep.subr.mxu0 0.0
      %570 = vmatpush2.msra.mxu0 0.0
      %571 = vmatprep.subr.mxu0 0.0
      %572 = vmatpush2.msra.mxu0 0.0
      %573 = vmatprep.subr.mxu0 0.0
      %574 = vmatpush2.msra.mxu0 0.0
      %575 = vmatprep.subr.mxu0 0.0
      %576 = vmatpush2.msra.mxu0 0.0
      %577 = vmatprep.subr.mxu0 0.0
      %578 = vmatpush2.msra.mxu0 0.0
      %579 = vmatprep.subr.mxu0 0.0
      %580 = vmatpush2.msra.mxu0 0.0
      %581 = vmatprep.subr.mxu0 0.0
      %582 = vmatpush2.msra.mxu0 0.0
      %583 = vmatprep.subr.mxu0 0.0
      %584 = vmatpush2.msra.mxu0 0.0
      %585 = vmatprep.subr.mxu0 0.0
      %586 = vmatpush2.msra.mxu0 0.0
      %587 = vmatprep.subr.mxu0 0.0
      %588 = vmatpush2.msra.mxu0 0.0
      %589 = vmatprep.subr.mxu0 0.0
      %590 = vmatpush2.msra.mxu0 0.0
      %591 = vmatprep.subr.mxu0 0.0
      %592 = vmatpush2.msra.mxu0 0.0
      %593 = vmatprep.subr.mxu0 0.0
      %594 = vmatpush2.msra.mxu0 0.0
      %595 = vmatprep.subr.mxu0 0.0
      %596 = vmatpush2.msra.mxu0 0.0
      %597 = vmatprep.subr.mxu0 0.0
      %598 = vmatpush2.msra.mxu0 0.0
      %599 = vmatprep.mubr.f32.mxu0 0.0
      %v600 = vand.u32 %v340, 4294901760
      %601 = vmatmul.mubr.f32.gmra.mxu0 %v600
      %v602 = vpop.f32.mrf.mxu0
      %v603 = vadd.f32 %v452, %v602
      %v604 = vpop.f32.mrf.mxu0
      %605 = vdwg.mxu0
      %606 = vmatprep.subr.mxu0 0.0
      %v607 = vand.u32 %v356, 4294901760
      %v608 = vsub.f32 %v356, %v607
      %609 = vmatpush1.msra.mxu0 %v608
      %610 = vmatprep.subr.mxu0 0.0
      %v611 = vand.u32 %v355, 4294901760
      %v612 = vsub.f32 %v355, %v611
      %613 = vmatpush1.msra.mxu0 %v612
      %614 = vmatprep.subr.mxu0 0.0
      %v615 = vand.u32 %v354, 4294901760
      %v616 = vsub.f32 %v354, %v615
      %617 = vmatpush1.msra.mxu0 %v616
      %618 = vmatprep.subr.mxu0 0.0
      %v619 = vand.u32 %v353, 4294901760
      %v620 = vsub.f32 %v353, %v619
      %621 = vmatpush1.msra.mxu0 %v620
      %622 = vmatprep.subr.mxu0 0.0
      %v623 = vand.u32 %v352, 4294901760
      %v624 = vsub.f32 %v352, %v623
      %625 = vmatpush1.msra.mxu0 %v624
      %626 = vmatprep.subr.mxu0 0.0
      %v627 = vand.u32 %v351, 4294901760
      %v628 = vsub.f32 %v351, %v627
      %629 = vmatpush1.msra.mxu0 %v628
      %630 = vmatprep.subr.mxu0 0.0
      %v631 = vand.u32 %v350, 4294901760
      %v632 = vsub.f32 %v350, %v631
      %633 = vmatpush1.msra.mxu0 %v632
      %634 = vmatprep.subr.mxu0 0.0
      %v635 = vand.u32 %v349, 4294901760
      %v636 = vsub.f32 %v349, %v635
      %637 = vmatpush1.msra.mxu0 %v636
      %638 = vmatprep.subr.mxu0 0.0
      %v639 = vand.u32 %v348, 4294901760
      %v640 = vsub.f32 %v348, %v639
      %641 = vmatpush1.msra.mxu0 %v640
      %642 = vmatprep.subr.mxu0 0.0
      %v643 = vand.u32 %v347, 4294901760
      %v644 = vsub.f32 %v347, %v643
      %645 = vmatpush1.msra.mxu0 %v644
      %646 = vmatprep.subr.mxu0 0.0
      %v647 = vand.u32 %v346, 4294901760
      %v648 = vsub.f32 %v346, %v647
      %649 = vmatpush1.msra.mxu0 %v648
      %650 = vmatprep.subr.mxu0 0.0
      %v651 = vand.u32 %v345, 4294901760
      %v652 = vsub.f32 %v345, %v651
      %653 = vmatpush1.msra.mxu0 %v652
      %654 = vmatprep.subr.mxu0 0.0
      %v655 = vand.u32 %v344, 4294901760
      %v656 = vsub.f32 %v344, %v655
      %657 = vmatpush1.msra.mxu0 %v656
      %658 = vmatprep.subr.mxu0 0.0
      %v659 = vand.u32 %v343, 4294901760
      %v660 = vsub.f32 %v343, %v659
      %661 = vmatpush1.msra.mxu0 %v660
      %662 = vmatprep.subr.mxu0 0.0
      %v663 = vand.u32 %v342, 4294901760
      %v664 = vsub.f32 %v342, %v663
      %665 = vmatpush1.msra.mxu0 %v664
      %666 = vmatprep.subr.mxu0 0.0
      %v667 = vand.u32 %v341, 4294901760
      %v668 = vsub.f32 %v341, %v667
      %669 = vmatpush1.msra.mxu0 %v668
      %670 = vmatprep.subr.mxu0 0.0
      %671 = vmatpush2.msra.mxu0 0.0
      %672 = vmatprep.subr.mxu0 0.0
      %673 = vmatpush2.msra.mxu0 0.0
      %674 = vmatprep.subr.mxu0 0.0
      %675 = vmatpush2.msra.mxu0 0.0
      %676 = vmatprep.subr.mxu0 0.0
      %677 = vmatpush2.msra.mxu0 0.0
      %678 = vmatprep.subr.mxu0 0.0
      %679 = vmatpush2.msra.mxu0 0.0
      %680 = vmatprep.subr.mxu0 0.0
      %681 = vmatpush2.msra.mxu0 0.0
      %682 = vmatprep.subr.mxu0 0.0
      %683 = vmatpush2.msra.mxu0 0.0
      %684 = vmatprep.subr.mxu0 0.0
      %685 = vmatpush2.msra.mxu0 0.0
      %686 = vmatprep.subr.mxu0 0.0
      %687 = vmatpush2.msra.mxu0 0.0
      %688 = vmatprep.subr.mxu0 0.0
      %689 = vmatpush2.msra.mxu0 0.0
      %690 = vmatprep.subr.mxu0 0.0
      %691 = vmatpush2.msra.mxu0 0.0
      %692 = vmatprep.subr.mxu0 0.0
      %693 = vmatpush2.msra.mxu0 0.0
      %694 = vmatprep.subr.mxu0 0.0
      %695 = vmatpush2.msra.mxu0 0.0
      %696 = vmatprep.subr.mxu0 0.0
      %697 = vmatpush2.msra.mxu0 0.0
      %698 = vmatprep.subr.mxu0 0.0
      %699 = vmatpush2.msra.mxu0 0.0
      %700 = vmatprep.subr.mxu0 0.0
      %701 = vmatpush2.msra.mxu0 0.0
      %702 = vmatprep.mubr.f32.mxu0 0.0
      %v703 = vand.u32 %v340, 4294901760
      %v704 = vsub.f32 %v340, %v703
      %705 = vmatmul.mubr.f32.gmra.mxu0 %v704
      %v706 = vpop.f32.mrf.mxu0
      %v707 = vadd.f32 %v603, %v706
      %v708 = vpop.f32.mrf.mxu0
      %709 = vdwg.mxu0
      %710 = vmatprep.subr.mxu0 0.0
      %v711 = vand.u32 %v356, 4294901760
      %712 = vmatpush1.msra.mxu0 %v711
      %713 = vmatprep.subr.mxu0 0.0
      %v714 = vand.u32 %v355, 4294901760
      %715 = vmatpush1.msra.mxu0 %v714
      %716 = vmatprep.subr.mxu0 0.0
      %v717 = vand.u32 %v354, 4294901760
      %718 = vmatpush1.msra.mxu0 %v717
      %719 = vmatprep.subr.mxu0 0.0
      %v720 = vand.u32 %v353, 4294901760
      %721 = vmatpush1.msra.mxu0 %v720
      %722 = vmatprep.subr.mxu0 0.0
      %v723 = vand.u32 %v352, 4294901760
      %724 = vmatpush1.msra.mxu0 %v723
      %725 = vmatprep.subr.mxu0 0.0
      %v726 = vand.u32 %v351, 4294901760
      %727 = vmatpush1.msra.mxu0 %v726
      %728 = vmatprep.subr.mxu0 0.0
      %v729 = vand.u32 %v350, 4294901760
      %730 = vmatpush1.msra.mxu0 %v729
      %731 = vmatprep.subr.mxu0 0.0
      %v732 = vand.u32 %v349, 4294901760
      %733 = vmatpush1.msra.mxu0 %v732
      %734 = vmatprep.subr.mxu0 0.0
      %v735 = vand.u32 %v348, 4294901760
      %736 = vmatpush1.msra.mxu0 %v735
      %737 = vmatprep.subr.mxu0 0.0
      %v738 = vand.u32 %v347, 4294901760
      %739 = vmatpush1.msra.mxu0 %v738
      %740 = vmatprep.subr.mxu0 0.0
      %v741 = vand.u32 %v346, 4294901760
      %742 = vmatpush1.msra.mxu0 %v741
      %743 = vmatprep.subr.mxu0 0.0
      %v744 = vand.u32 %v345, 4294901760
      %745 = vmatpush1.msra.mxu0 %v744
      %746 = vmatprep.subr.mxu0 0.0
      %v747 = vand.u32 %v344, 4294901760
      %748 = vmatpush1.msra.mxu0 %v747
      %749 = vmatprep.subr.mxu0 0.0
      %v750 = vand.u32 %v343, 4294901760
      %751 = vmatpush1.msra.mxu0 %v750
      %752 = vmatprep.subr.mxu0 0.0
      %v753 = vand.u32 %v342, 4294901760
      %754 = vmatpush1.msra.mxu0 %v753
      %755 = vmatprep.subr.mxu0 0.0
      %v756 = vand.u32 %v341, 4294901760
      %757 = vmatpush1.msra.mxu0 %v756
      %758 = vmatprep.subr.mxu0 0.0
      %759 = vmatpush2.msra.mxu0 0.0
      %760 = vmatprep.subr.mxu0 0.0
      %761 = vmatpush2.msra.mxu0 0.0
      %762 = vmatprep.subr.mxu0 0.0
      %763 = vmatpush2.msra.mxu0 0.0
      %764 = vmatprep.subr.mxu0 0.0
      %765 = vmatpush2.msra.mxu0 0.0
      %766 = vmatprep.subr.mxu0 0.0
      %767 = vmatpush2.msra.mxu0 0.0
      %768 = vmatprep.subr.mxu0 0.0
      %769 = vmatpush2.msra.mxu0 0.0
      %770 = vmatprep.subr.mxu0 0.0
      %771 = vmatpush2.msra.mxu0 0.0
      %772 = vmatprep.subr.mxu0 0.0
      %773 = vmatpush2.msra.mxu0 0.0
      %774 = vmatprep.subr.mxu0 0.0
      %775 = vmatpush2.msra.mxu0 0.0
      %776 = vmatprep.subr.mxu0 0.0
      %777 = vmatpush2.msra.mxu0 0.0
      %778 = vmatprep.subr.mxu0 0.0
      %779 = vmatpush2.msra.mxu0 0.0
      %780 = vmatprep.subr.mxu0 0.0
      %781 = vmatpush2.msra.mxu0 0.0
      %782 = vmatprep.subr.mxu0 0.0
      %783 = vmatpush2.msra.mxu0 0.0
      %784 = vmatprep.subr.mxu0 0.0
      %785 = vmatpush2.msra.mxu0 0.0
      %786 = vmatprep.subr.mxu0 0.0
      %787 = vmatpush2.msra.mxu0 0.0
      %788 = vmatprep.subr.mxu0 0.0
      %789 = vmatpush2.msra.mxu0 0.0
      %790 = vmatprep.mubr.f32.mxu0 0.0
      %v791 = vand.u32 %v340, 4294901760
      %v792 = vsub.f32 %v340, %v791
      %v793 = vand.u32 %v792, 4294901760
      %794 = vmatmul.mubr.f32.gmra.mxu0 %v793
      %v795 = vpop.f32.mrf.mxu0
      %v796 = vadd.f32 %v707, %v795
      %v797 = vpop.f32.mrf.mxu0
      %798 = vdwg.mxu0
      %799 = vmatprep.subr.mxu0 0.0
      %v800 = vand.u32 %v356, 4294901760
      %v801 = vsub.f32 %v356, %v800
      %v802 = vand.u32 %v801, 4294901760
      %803 = vmatpush1.msra.mxu0 %v802
      %804 = vmatprep.subr.mxu0 0.0
      %v805 = vand.u32 %v355, 4294901760
      %v806 = vsub.f32 %v355, %v805
      %v807 = vand.u32 %v806, 4294901760
      %808 = vmatpush1.msra.mxu0 %v807
      %809 = vmatprep.subr.mxu0 0.0
      %v810 = vand.u32 %v354, 4294901760
      %v811 = vsub.f32 %v354, %v810
      %v812 = vand.u32 %v811, 4294901760
      %813 = vmatpush1.msra.mxu0 %v812
      %814 = vmatprep.subr.mxu0 0.0
      %v815 = vand.u32 %v353, 4294901760
      %v816 = vsub.f32 %v353, %v815
      %v817 = vand.u32 %v816, 4294901760
      %818 = vmatpush1.msra.mxu0 %v817
      %819 = vmatprep.subr.mxu0 0.0
      %v820 = vand.u32 %v352, 4294901760
      %v821 = vsub.f32 %v352, %v820
      %v822 = vand.u32 %v821, 4294901760
      %823 = vmatpush1.msra.mxu0 %v822
      %824 = vmatprep.subr.mxu0 0.0
      %v825 = vand.u32 %v351, 4294901760
      %v826 = vsub.f32 %v351, %v825
      %v827 = vand.u32 %v826, 4294901760
      %828 = vmatpush1.msra.mxu0 %v827
      %829 = vmatprep.subr.mxu0 0.0
      %v830 = vand.u32 %v350, 4294901760
      %v831 = vsub.f32 %v350, %v830
      %v832 = vand.u32 %v831, 4294901760
      %833 = vmatpush1.msra.mxu0 %v832
      %834 = vmatprep.subr.mxu0 0.0
      %v835 = vand.u32 %v349, 4294901760
      %v836 = vsub.f32 %v349, %v835
      %v837 = vand.u32 %v836, 4294901760
      %838 = vmatpush1.msra.mxu0 %v837
      %839 = vmatprep.subr.mxu0 0.0
      %v840 = vand.u32 %v348, 4294901760
      %v841 = vsub.f32 %v348, %v840
      %v842 = vand.u32 %v841, 4294901760
      %843 = vmatpush1.msra.mxu0 %v842
      %844 = vmatprep.subr.mxu0 0.0
      %v845 = vand.u32 %v347, 4294901760
      %v846 = vsub.f32 %v347, %v845
      %v847 = vand.u32 %v846, 4294901760
      %848 = vmatpush1.msra.mxu0 %v847
      %849 = vmatprep.subr.mxu0 0.0
      %v850 = vand.u32 %v346, 4294901760
      %v851 = vsub.f32 %v346, %v850
      %v852 = vand.u32 %v851, 4294901760
      %853 = vmatpush1.msra.mxu0 %v852
      %854 = vmatprep.subr.mxu0 0.0
      %v855 = vand.u32 %v345, 4294901760
      %v856 = vsub.f32 %v345, %v855
      %v857 = vand.u32 %v856, 4294901760
      %858 = vmatpush1.msra.mxu0 %v857
      %859 = vmatprep.subr.mxu0 0.0
      %v860 = vand.u32 %v344, 4294901760
      %v861 = vsub.f32 %v344, %v860
      %v862 = vand.u32 %v861, 4294901760
      %863 = vmatpush1.msra.mxu0 %v862
      %864 = vmatprep.subr.mxu0 0.0
      %v865 = vand.u32 %v343, 4294901760
      %v866 = vsub.f32 %v343, %v865
      %v867 = vand.u32 %v866, 4294901760
      %868 = vmatpush1.msra.mxu0 %v867
      %869 = vmatprep.subr.mxu0 0.0
      %v870 = vand.u32 %v342, 4294901760
      %v871 = vsub.f32 %v342, %v870
      %v872 = vand.u32 %v871, 4294901760
      %873 = vmatpush1.msra.mxu0 %v872
      %874 = vmatprep.subr.mxu0 0.0
      %v875 = vand.u32 %v341, 4294901760
      %v876 = vsub.f32 %v341, %v875
      %v877 = vand.u32 %v876, 4294901760
      %878 = vmatpush1.msra.mxu0 %v877
      %879 = vmatprep.subr.mxu0 0.0
      %880 = vmatpush2.msra.mxu0 0.0
      %881 = vmatprep.subr.mxu0 0.0
      %882 = vmatpush2.msra.mxu0 0.0
      %883 = vmatprep.subr.mxu0 0.0
      %884 = vmatpush2.msra.mxu0 0.0
      %885 = vmatprep.subr.mxu0 0.0
      %886 = vmatpush2.msra.mxu0 0.0
      %887 = vmatprep.subr.mxu0 0.0
      %888 = vmatpush2.msra.mxu0 0.0
      %889 = vmatprep.subr.mxu0 0.0
      %890 = vmatpush2.msra.mxu0 0.0
      %891 = vmatprep.subr.mxu0 0.0
      %892 = vmatpush2.msra.mxu0 0.0
      %893 = vmatprep.subr.mxu0 0.0
      %894 = vmatpush2.msra.mxu0 0.0
      %895 = vmatprep.subr.mxu0 0.0
      %896 = vmatpush2.msra.mxu0 0.0
      %897 = vmatprep.subr.mxu0 0.0
      %898 = vmatpush2.msra.mxu0 0.0
      %899 = vmatprep.subr.mxu0 0.0
      %900 = vmatpush2.msra.mxu0 0.0
      %901 = vmatprep.subr.mxu0 0.0
      %902 = vmatpush2.msra.mxu0 0.0
      %903 = vmatprep.subr.mxu0 0.0
      %904 = vmatpush2.msra.mxu0 0.0
      %905 = vmatprep.subr.mxu0 0.0
      %906 = vmatpush2.msra.mxu0 0.0
      %907 = vmatprep.subr.mxu0 0.0
      %908 = vmatpush2.msra.mxu0 0.0
      %909 = vmatprep.subr.mxu0 0.0
      %910 = vmatpush2.msra.mxu0 0.0
      %911 = vmatprep.mubr.f32.mxu0 0.0
      %v912 = vand.u32 %v340, 4294901760
      %913 = vmatmul.mubr.f32.gmra.mxu0 %v912
      %v914 = vpop.f32.mrf.mxu0
      %v915 = vadd.f32 %v796, %v914
      %v916 = vpop.f32.mrf.mxu0
      %917 = vdwg.mxu0
      %918 = vmatprep.subr.mxu0 0.0
      %v919 = vand.u32 %v356, 4294901760
      %920 = vmatpush1.msra.mxu0 %v919
      %921 = vmatprep.subr.mxu0 0.0
      %v922 = vand.u32 %v355, 4294901760
      %923 = vmatpush1.msra.mxu0 %v922
      %924 = vmatprep.subr.mxu0 0.0
      %v925 = vand.u32 %v354, 4294901760
      %926 = vmatpush1.msra.mxu0 %v925
      %927 = vmatprep.subr.mxu0 0.0
      %v928 = vand.u32 %v353, 4294901760
      %929 = vmatpush1.msra.mxu0 %v928
      %930 = vmatprep.subr.mxu0 0.0
      %v931 = vand.u32 %v352, 4294901760
      %932 = vmatpush1.msra.mxu0 %v931
      %933 = vmatprep.subr.mxu0 0.0
      %v934 = vand.u32 %v351, 4294901760
      %935 = vmatpush1.msra.mxu0 %v934
      %936 = vmatprep.subr.mxu0 0.0
      %v937 = vand.u32 %v350, 4294901760
      %938 = vmatpush1.msra.mxu0 %v937
      %939 = vmatprep.subr.mxu0 0.0
      %v940 = vand.u32 %v349, 4294901760
      %941 = vmatpush1.msra.mxu0 %v940
      %942 = vmatprep.subr.mxu0 0.0
      %v943 = vand.u32 %v348, 4294901760
      %944 = vmatpush1.msra.mxu0 %v943
      %945 = vmatprep.subr.mxu0 0.0
      %v946 = vand.u32 %v347, 4294901760
      %947 = vmatpush1.msra.mxu0 %v946
      %948 = vmatprep.subr.mxu0 0.0
      %v949 = vand.u32 %v346, 4294901760
      %950 = vmatpush1.msra.mxu0 %v949
      %951 = vmatprep.subr.mxu0 0.0
      %v952 = vand.u32 %v345, 4294901760
      %953 = vmatpush1.msra.mxu0 %v952
      %954 = vmatprep.subr.mxu0 0.0
      %v955 = vand.u32 %v344, 4294901760
      %956 = vmatpush1.msra.mxu0 %v955
      %957 = vmatprep.subr.mxu0 0.0
      %v958 = vand.u32 %v343, 4294901760
      %959 = vmatpush1.msra.mxu0 %v958
      %960 = vmatprep.subr.mxu0 0.0
      %v961 = vand.u32 %v342, 4294901760
      %962 = vmatpush1.msra.mxu0 %v961
      %963 = vmatprep.subr.mxu0 0.0
      %v964 = vand.u32 %v341, 4294901760
      %965 = vmatpush1.msra.mxu0 %v964
      %966 = vmatprep.subr.mxu0 0.0
      %967 = vmatpush2.msra.mxu0 0.0
      %968 = vmatprep.subr.mxu0 0.0
      %969 = vmatpush2.msra.mxu0 0.0
      %970 = vmatprep.subr.mxu0 0.0
      %971 = vmatpush2.msra.mxu0 0.0
      %972 = vmatprep.subr.mxu0 0.0
      %973 = vmatpush2.msra.mxu0 0.0
      %974 = vmatprep.subr.mxu0 0.0
      %975 = vmatpush2.msra.mxu0 0.0
      %976 = vmatprep.subr.mxu0 0.0
      %977 = vmatpush2.msra.mxu0 0.0
      %978 = vmatprep.subr.mxu0 0.0
      %979 = vmatpush2.msra.mxu0 0.0
      %980 = vmatprep.subr.mxu0 0.0
      %981 = vmatpush2.msra.mxu0 0.0
      %982 = vmatprep.subr.mxu0 0.0
      %983 = vmatpush2.msra.mxu0 0.0
      %984 = vmatprep.subr.mxu0 0.0
      %985 = vmatpush2.msra.mxu0 0.0
      %986 = vmatprep.subr.mxu0 0.0
      %987 = vmatpush2.msra.mxu0 0.0
      %988 = vmatprep.subr.mxu0 0.0
      %989 = vmatpush2.msra.mxu0 0.0
      %990 = vmatprep.subr.mxu0 0.0
      %991 = vmatpush2.msra.mxu0 0.0
      %992 = vmatprep.subr.mxu0 0.0
      %993 = vmatpush2.msra.mxu0 0.0
      %994 = vmatprep.subr.mxu0 0.0
      %995 = vmatpush2.msra.mxu0 0.0
      %996 = vmatprep.subr.mxu0 0.0
      %997 = vmatpush2.msra.mxu0 0.0
      %998 = vmatprep.mubr.f32.mxu0 0.0
      %v999 = vand.u32 %v340, 4294901760
      %1000 = vmatmul.mubr.f32.gmra.mxu0 %v999
      %v1001 = vpop.f32.mrf.mxu0
      %v1002 = vadd.f32 %v915, %v1001
      %v1003 = vpop.f32.mrf.mxu0
      %1004 = vdwg.mxu0
      %v1005 = vmax.f32 %v1002, 0.0
      %v1006 = vld [vmem:[%s5] sm:$0xff]
      %v1007 = vld [vmem:[%s5 + $0x8] sm:$0xff]
      %v1008 = vld [vmem:[%s5 + $0x10] sm:$0xff]
      %v1009 = vld [vmem:[%s5 + $0x18] sm:$0xff]
      %v1010 = vld [vmem:[%s6] sm:$0x1]
      %v1012 = vlaneseq
      %v1013 = vshrl.u32 %v1012, 7
      %v1014 = vsub.s32 0, %v1013
      %v1015 = vrot.slane %v1010, %v1014
      %vm1017 = vcmask 261120
      %v1019 = vsel %vm1017, %v1005, 0
      %1021 = vmatprep.subr.mxu0 0.0
      %1022 = vmatpush1.msra.mxu0 0.0
      %1023 = vmatprep.subr.mxu0 0.0
      %1024 = vmatpush1.msra.mxu0 0.0
      %1025 = vmatprep.subr.mxu0 0.0
      %1026 = vmatpush1.msra.mxu0 0.0
      %1027 = vmatprep.subr.mxu0 0.0
      %1028 = vmatpush1.msra.mxu0 0.0
      %1029 = vmatprep.subr.mxu0 0.0
      %1030 = vmatpush1.msra.mxu0 0.0
      %1031 = vmatprep.subr.mxu0 0.0
      %1032 = vmatpush1.msra.mxu0 0.0
      %1033 = vmatprep.subr.mxu0 0.0
      %1034 = vmatpush1.msra.mxu0 0.0
      %1035 = vmatprep.subr.mxu0 0.0
      %1036 = vmatpush1.msra.mxu0 0.0
      %1037 = vmatprep.subr.mxu0 0.0
      %1038 = vmatpush1.msra.mxu0 0.0
      %1039 = vmatprep.subr.mxu0 0.0
      %1040 = vmatpush1.msra.mxu0 0.0
      %1041 = vmatprep.subr.mxu0 0.0
      %1042 = vmatpush1.msra.mxu0 0.0
      %1043 = vmatprep.subr.mxu0 0.0
      %1044 = vmatpush1.msra.mxu0 0.0
      %1045 = vmatprep.subr.mxu0 0.0
      %v1046 = vand.u32 %v1009, 4294901760
      %1047 = vmatpush1.msra.mxu0 %v1046
      %1048 = vmatprep.subr.mxu0 0.0
      %v1049 = vand.u32 %v1008, 4294901760
      %1050 = vmatpush1.msra.mxu0 %v1049
      %1051 = vmatprep.subr.mxu0 0.0
      %v1052 = vand.u32 %v1007, 4294901760
      %1053 = vmatpush1.msra.mxu0 %v1052
      %1054 = vmatprep.subr.mxu0 0.0
      %v1055 = vand.u32 %v1006, 4294901760
      %1056 = vmatpush1.msra.mxu0 %v1055
      %1057 = vmatprep.subr.mxu0 0.0
      %1058 = vmatpush2.msra.mxu0 0.0
      %1059 = vmatprep.subr.mxu0 0.0
      %1060 = vmatpush2.msra.mxu0 0.0
      %1061 = vmatprep.subr.mxu0 0.0
      %1062 = vmatpush2.msra.mxu0 0.0
      %1063 = vmatprep.subr.mxu0 0.0
      %1064 = vmatpush2.msra.mxu0 0.0
      %1065 = vmatprep.subr.mxu0 0.0
      %1066 = vmatpush2.msra.mxu0 0.0
      %1067 = vmatprep.subr.mxu0 0.0
      %1068 = vmatpush2.msra.mxu0 0.0
      %1069 = vmatprep.subr.mxu0 0.0
      %1070 = vmatpush2.msra.mxu0 0.0
      %1071 = vmatprep.subr.mxu0 0.0
      %1072 = vmatpush2.msra.mxu0 0.0
      %1073 = vmatprep.subr.mxu0 0.0
      %1074 = vmatpush2.msra.mxu0 0.0
      %1075 = vmatprep.subr.mxu0 0.0
      %1076 = vmatpush2.msra.mxu0 0.0
      %1077 = vmatprep.subr.mxu0 0.0
      %1078 = vmatpush2.msra.mxu0 0.0
      %1079 = vmatprep.subr.mxu0 0.0
      %1080 = vmatpush2.msra.mxu0 0.0
      %1081 = vmatprep.subr.mxu0 0.0
      %1082 = vmatpush2.msra.mxu0 0.0
      %1083 = vmatprep.subr.mxu0 0.0
      %1084 = vmatpush2.msra.mxu0 0.0
      %1085 = vmatprep.subr.mxu0 0.0
      %1086 = vmatpush2.msra.mxu0 0.0
      %1087 = vmatprep.subr.mxu0 0.0
      %1088 = vmatpush2.msra.mxu0 0.0
      %1089 = vmatprep.mubr.f32.mxu0 0.0
      %v1090 = vand.u32 %v1019, 4294901760
      %v1091 = vsub.f32 %v1019, %v1090
      %v1092 = vand.u32 %v1091, 4294901760
      %v1093 = vsub.f32 %v1091, %v1092
      %v1094 = vand.u32 %v1093, 4294901760
      %1095 = vmatmul.mubr.f32.gmra.mxu0 %v1094
      %v1096 = vpop.f32.mrf.mxu0
      %v1097 = vadd.f32 %v1015, %v1096
      %v1098 = vpop.f32.mrf.mxu0
      %1099 = vdwg.mxu0
      %1100 = vmatprep.subr.mxu0 0.0
      %1101 = vmatpush1.msra.mxu0 0.0
      %1102 = vmatprep.subr.mxu0 0.0
      %1103 = vmatpush1.msra.mxu0 0.0
      %1104 = vmatprep.subr.mxu0 0.0
      %1105 = vmatpush1.msra.mxu0 0.0
      %1106 = vmatprep.subr.mxu0 0.0
      %1107 = vmatpush1.msra.mxu0 0.0
      %1108 = vmatprep.subr.mxu0 0.0
      %1109 = vmatpush1.msra.mxu0 0.0
      %1110 = vmatprep.subr.mxu0 0.0
      %1111 = vmatpush1.msra.mxu0 0.0
      %1112 = vmatprep.subr.mxu0 0.0
      %1113 = vmatpush1.msra.mxu0 0.0
      %1114 = vmatprep.subr.mxu0 0.0
      %1115 = vmatpush1.msra.mxu0 0.0
      %1116 = vmatprep.subr.mxu0 0.0
      %1117 = vmatpush1.msra.mxu0 0.0
      %1118 = vmatprep.subr.mxu0 0.0
      %1119 = vmatpush1.msra.mxu0 0.0
      %1120 = vmatprep.subr.mxu0 0.0
      %1121 = vmatpush1.msra.mxu0 0.0
      %1122 = vmatprep.subr.mxu0 0.0
      %1123 = vmatpush1.msra.mxu0 0.0
      %1124 = vmatprep.subr.mxu0 0.0
      %v1125 = vand.u32 %v1009, 4294901760
      %v1126 = vsub.f32 %v1009, %v1125
      %v1127 = vand.u32 %v1126, 4294901760
      %v1128 = vsub.f32 %v1126, %v1127
      %v1129 = vand.u32 %v1128, 4294901760
      %1130 = vmatpush1.msra.mxu0 %v1129
      %1131 = vmatprep.subr.mxu0 0.0
      %v1132 = vand.u32 %v1008, 4294901760
      %v1133 = vsub.f32 %v1008, %v1132
      %v1134 = vand.u32 %v1133, 4294901760
      %v1135 = vsub.f32 %v1133, %v1134
      %v1136 = vand.u32 %v1135, 4294901760
      %1137 = vmatpush1.msra.mxu0 %v1136
      %1138 = vmatprep.subr.mxu0 0.0
      %v1139 = vand.u32 %v1007, 4294901760
      %v1140 = vsub.f32 %v1007, %v1139
      %v1141 = vand.u32 %v1140, 4294901760
      %v1142 = vsub.f32 %v1140, %v1141
      %v1143 = vand.u32 %v1142, 4294901760
      %1144 = vmatpush1.msra.mxu0 %v1143
      %1145 = vmatprep.subr.mxu0 0.0
      %v1146 = vand.u32 %v1006, 4294901760
      %v1147 = vsub.f32 %v1006, %v1146
      %v1148 = vand.u32 %v1147, 4294901760
      %v1149 = vsub.f32 %v1147, %v1148
      %v1150 = vand.u32 %v1149, 4294901760
      %1151 = vmatpush1.msra.mxu0 %v1150
      %1152 = vmatprep.subr.mxu0 0.0
      %1153 = vmatpush2.msra.mxu0 0.0
      %1154 = vmatprep.subr.mxu0 0.0
      %1155 = vmatpush2.msra.mxu0 0.0
      %1156 = vmatprep.subr.mxu0 0.0
      %1157 = vmatpush2.msra.mxu0 0.0
      %1158 = vmatprep.subr.mxu0 0.0
      %1159 = vmatpush2.msra.mxu0 0.0
      %1160 = vmatprep.subr.mxu0 0.0
      %1161 = vmatpush2.msra.mxu0 0.0
      %1162 = vmatprep.subr.mxu0 0.0
      %1163 = vmatpush2.msra.mxu0 0.0
      %1164 = vmatprep.subr.mxu0 0.0
      %1165 = vmatpush2.msra.mxu0 0.0
      %1166 = vmatprep.subr.mxu0 0.0
      %1167 = vmatpush2.msra.mxu0 0.0
      %1168 = vmatprep.subr.mxu0 0.0
      %1169 = vmatpush2.msra.mxu0 0.0
      %1170 = vmatprep.subr.mxu0 0.0
      %1171 = vmatpush2.msra.mxu0 0.0
      %1172 = vmatprep.subr.mxu0 0.0
      %1173 = vmatpush2.msra.mxu0 0.0
      %1174 = vmatprep.subr.mxu0 0.0
      %1175 = vmatpush2.msra.mxu0 0.0
      %1176 = vmatprep.subr.mxu0 0.0
      %1177 = vmatpush2.msra.mxu0 0.0
      %1178 = vmatprep.subr.mxu0 0.0
      %1179 = vmatpush2.msra.mxu0 0.0
      %1180 = vmatprep.subr.mxu0 0.0
      %1181 = vmatpush2.msra.mxu0 0.0
      %1182 = vmatprep.subr.mxu0 0.0
      %1183 = vmatpush2.msra.mxu0 0.0
      %1184 = vmatprep.mubr.f32.mxu0 0.0
      %v1185 = vand.u32 %v1019, 4294901760
      %1186 = vmatmul.mubr.f32.gmra.mxu0 %v1185
      %v1187 = vpop.f32.mrf.mxu0
      %v1188 = vadd.f32 %v1097, %v1187
      %v1189 = vpop.f32.mrf.mxu0
      %1190 = vdwg.mxu0
      %1191 = vmatprep.subr.mxu0 0.0
      %1192 = vmatpush1.msra.mxu0 0.0
      %1193 = vmatprep.subr.mxu0 0.0
      %1194 = vmatpush1.msra.mxu0 0.0
      %1195 = vmatprep.subr.mxu0 0.0
      %1196 = vmatpush1.msra.mxu0 0.0
      %1197 = vmatprep.subr.mxu0 0.0
      %1198 = vmatpush1.msra.mxu0 0.0
      %1199 = vmatprep.subr.mxu0 0.0
      %1200 = vmatpush1.msra.mxu0 0.0
      %1201 = vmatprep.subr.mxu0 0.0
      %1202 = vmatpush1.msra.mxu0 0.0
      %1203 = vmatprep.subr.mxu0 0.0
      %1204 = vmatpush1.msra.mxu0 0.0
      %1205 = vmatprep.subr.mxu0 0.0
      %1206 = vmatpush1.msra.mxu0 0.0
      %1207 = vmatprep.subr.mxu0 0.0
      %1208 = vmatpush1.msra.mxu0 0.0
      %1209 = vmatprep.subr.mxu0 0.0
      %1210 = vmatpush1.msra.mxu0 0.0
      %1211 = vmatprep.subr.mxu0 0.0
      %1212 = vmatpush1.msra.mxu0 0.0
      %1213 = vmatprep.subr.mxu0 0.0
      %1214 = vmatpush1.msra.mxu0 0.0
      %1215 = vmatprep.subr.mxu0 0.0
      %v1216 = vand.u32 %v1009, 4294901760
      %v1217 = vsub.f32 %v1009, %v1216
      %1218 = vmatpush1.msra.mxu0 %v1217
      %1219 = vmatprep.subr.mxu0 0.0
      %v1220 = vand.u32 %v1008, 4294901760
      %v1221 = vsub.f32 %v1008, %v1220
      %1222 = vmatpush1.msra.mxu0 %v1221
      %1223 = vmatprep.subr.mxu0 0.0
      %v1224 = vand.u32 %v1007, 4294901760
      %v1225 = vsub.f32 %v1007, %v1224
      %1226 = vmatpush1.msra.mxu0 %v1225
      %1227 = vmatprep.subr.mxu0 0.0
      %v1228 = vand.u32 %v1006, 4294901760
      %v1229 = vsub.f32 %v1006, %v1228
      %1230 = vmatpush1.msra.mxu0 %v1229
      %1231 = vmatprep.subr.mxu0 0.0
      %1232 = vmatpush2.msra.mxu0 0.0
      %1233 = vmatprep.subr.mxu0 0.0
      %1234 = vmatpush2.msra.mxu0 0.0
      %1235 = vmatprep.subr.mxu0 0.0
      %1236 = vmatpush2.msra.mxu0 0.0
      %1237 = vmatprep.subr.mxu0 0.0
      %1238 = vmatpush2.msra.mxu0 0.0
      %1239 = vmatprep.subr.mxu0 0.0
      %1240 = vmatpush2.msra.mxu0 0.0
      %1241 = vmatprep.subr.mxu0 0.0
      %1242 = vmatpush2.msra.mxu0 0.0
      %1243 = vmatprep.subr.mxu0 0.0
      %1244 = vmatpush2.msra.mxu0 0.0
      %1245 = vmatprep.subr.mxu0 0.0
      %1246 = vmatpush2.msra.mxu0 0.0
      %1247 = vmatprep.subr.mxu0 0.0
      %1248 = vmatpush2.msra.mxu0 0.0
      %1249 = vmatprep.subr.mxu0 0.0
      %1250 = vmatpush2.msra.mxu0 0.0
      %1251 = vmatprep.subr.mxu0 0.0
      %1252 = vmatpush2.msra.mxu0 0.0
      %1253 = vmatprep.subr.mxu0 0.0
      %1254 = vmatpush2.msra.mxu0 0.0
      %1255 = vmatprep.subr.mxu0 0.0
      %1256 = vmatpush2.msra.mxu0 0.0
      %1257 = vmatprep.subr.mxu0 0.0
      %1258 = vmatpush2.msra.mxu0 0.0
      %1259 = vmatprep.subr.mxu0 0.0
      %1260 = vmatpush2.msra.mxu0 0.0
      %1261 = vmatprep.subr.mxu0 0.0
      %1262 = vmatpush2.msra.mxu0 0.0
      %1263 = vmatprep.mubr.f32.mxu0 0.0
      %v1264 = vand.u32 %v1019, 4294901760
      %v1265 = vsub.f32 %v1019, %v1264
      %1266 = vmatmul.mubr.f32.gmra.mxu0 %v1265
      %v1267 = vpop.f32.mrf.mxu0
      %v1268 = vadd.f32 %v1188, %v1267
      %v1269 = vpop.f32.mrf.mxu0
      %1270 = vdwg.mxu0
      %1271 = vmatprep.subr.mxu0 0.0
      %1272 = vmatpush1.msra.mxu0 0.0
      %1273 = vmatprep.subr.mxu0 0.0
      %1274 = vmatpush1.msra.mxu0 0.0
      %1275 = vmatprep.subr.mxu0 0.0
      %1276 = vmatpush1.msra.mxu0 0.0
      %1277 = vmatprep.subr.mxu0 0.0
      %1278 = vmatpush1.msra.mxu0 0.0
      %1279 = vmatprep.subr.mxu0 0.0
      %1280 = vmatpush1.msra.mxu0 0.0
      %1281 = vmatprep.subr.mxu0 0.0
      %1282 = vmatpush1.msra.mxu0 0.0
      %1283 = vmatprep.subr.mxu0 0.0
      %1284 = vmatpush1.msra.mxu0 0.0
      %1285 = vmatprep.subr.mxu0 0.0
      %1286 = vmatpush1.msra.mxu0 0.0
      %1287 = vmatprep.subr.mxu0 0.0
      %1288 = vmatpush1.msra.mxu0 0.0
      %1289 = vmatprep.subr.mxu0 0.0
      %1290 = vmatpush1.msra.mxu0 0.0
      %1291 = vmatprep.subr.mxu0 0.0
      %1292 = vmatpush1.msra.mxu0 0.0
      %1293 = vmatprep.subr.mxu0 0.0
      %1294 = vmatpush1.msra.mxu0 0.0
      %1295 = vmatprep.subr.mxu0 0.0
      %v1296 = vand.u32 %v1009, 4294901760
      %1297 = vmatpush1.msra.mxu0 %v1296
      %1298 = vmatprep.subr.mxu0 0.0
      %v1299 = vand.u32 %v1008, 4294901760
      %1300 = vmatpush1.msra.mxu0 %v1299
      %1301 = vmatprep.subr.mxu0 0.0
      %v1302 = vand.u32 %v1007, 4294901760
      %1303 = vmatpush1.msra.mxu0 %v1302
      %1304 = vmatprep.subr.mxu0 0.0
      %v1305 = vand.u32 %v1006, 4294901760
      %1306 = vmatpush1.msra.mxu0 %v1305
      %1307 = vmatprep.subr.mxu0 0.0
      %1308 = vmatpush2.msra.mxu0 0.0
      %1309 = vmatprep.subr.mxu0 0.0
      %1310 = vmatpush2.msra.mxu0 0.0
      %1311 = vmatprep.subr.mxu0 0.0
      %1312 = vmatpush2.msra.mxu0 0.0
      %1313 = vmatprep.subr.mxu0 0.0
      %1314 = vmatpush2.msra.mxu0 0.0
      %1315 = vmatprep.subr.mxu0 0.0
      %1316 = vmatpush2.msra.mxu0 0.0
      %1317 = vmatprep.subr.mxu0 0.0
      %1318 = vmatpush2.msra.mxu0 0.0
      %1319 = vmatprep.subr.mxu0 0.0
      %1320 = vmatpush2.msra.mxu0 0.0
      %1321 = vmatprep.subr.mxu0 0.0
      %1322 = vmatpush2.msra.mxu0 0.0
      %1323 = vmatprep.subr.mxu0 0.0
      %1324 = vmatpush2.msra.mxu0 0.0
      %1325 = vmatprep.subr.mxu0 0.0
      %1326 = vmatpush2.msra.mxu0 0.0
      %1327 = vmatprep.subr.mxu0 0.0
      %1328 = vmatpush2.msra.mxu0 0.0
      %1329 = vmatprep.subr.mxu0 0.0
      %1330 = vmatpush2.msra.mxu0 0.0
      %1331 = vmatprep.subr.mxu0 0.0
      %1332 = vmatpush2.msra.mxu0 0.0
      %1333 = vmatprep.subr.mxu0 0.0
      %1334 = vmatpush2.msra.mxu0 0.0
      %1335 = vmatprep.subr.mxu0 0.0
      %1336 = vmatpush2.msra.mxu0 0.0
      %1337 = vmatprep.subr.mxu0 0.0
      %1338 = vmatpush2.msra.mxu0 0.0
      %1339 = vmatprep.mubr.f32.mxu0 0.0
      %v1340 = vand.u32 %v1019, 4294901760
      %v1341 = vsub.f32 %v1019, %v1340
      %v1342 = vand.u32 %v1341, 4294901760
      %1343 = vmatmul.mubr.f32.gmra.mxu0 %v1342
      %v1344 = vpop.f32.mrf.mxu0
      %v1345 = vadd.f32 %v1268, %v1344
      %v1346 = vpop.f32.mrf.mxu0
      %1347 = vdwg.mxu0
      %1348 = vmatprep.subr.mxu0 0.0
      %1349 = vmatpush1.msra.mxu0 0.0
      %1350 = vmatprep.subr.mxu0 0.0
      %1351 = vmatpush1.msra.mxu0 0.0
      %1352 = vmatprep.subr.mxu0 0.0
      %1353 = vmatpush1.msra.mxu0 0.0
      %1354 = vmatprep.subr.mxu0 0.0
      %1355 = vmatpush1.msra.mxu0 0.0
      %1356 = vmatprep.subr.mxu0 0.0
      %1357 = vmatpush1.msra.mxu0 0.0
      %1358 = vmatprep.subr.mxu0 0.0
      %1359 = vmatpush1.msra.mxu0 0.0
      %1360 = vmatprep.subr.mxu0 0.0
      %1361 = vmatpush1.msra.mxu0 0.0
      %1362 = vmatprep.subr.mxu0 0.0
      %1363 = vmatpush1.msra.mxu0 0.0
      %1364 = vmatprep.subr.mxu0 0.0
      %1365 = vmatpush1.msra.mxu0 0.0
      %1366 = vmatprep.subr.mxu0 0.0
      %1367 = vmatpush1.msra.mxu0 0.0
      %1368 = vmatprep.subr.mxu0 0.0
      %1369 = vmatpush1.msra.mxu0 0.0
      %1370 = vmatprep.subr.mxu0 0.0
      %1371 = vmatpush1.msra.mxu0 0.0
      %1372 = vmatprep.subr.mxu0 0.0
      %v1373 = vand.u32 %v1009, 4294901760
      %v1374 = vsub.f32 %v1009, %v1373
      %v1375 = vand.u32 %v1374, 4294901760
      %1376 = vmatpush1.msra.mxu0 %v1375
      %1377 = vmatprep.subr.mxu0 0.0
      %v1378 = vand.u32 %v1008, 4294901760
      %v1379 = vsub.f32 %v1008, %v1378
      %v1380 = vand.u32 %v1379, 4294901760
      %1381 = vmatpush1.msra.mxu0 %v1380
      %1382 = vmatprep.subr.mxu0 0.0
      %v1383 = vand.u32 %v1007, 4294901760
      %v1384 = vsub.f32 %v1007, %v1383
      %v1385 = vand.u32 %v1384, 4294901760
      %1386 = vmatpush1.msra.mxu0 %v1385
      %1387 = vmatprep.subr.mxu0 0.0
      %v1388 = vand.u32 %v1006, 4294901760
      %v1389 = vsub.f32 %v1006, %v1388
      %v1390 = vand.u32 %v1389, 4294901760
      %1391 = vmatpush1.msra.mxu0 %v1390
      %1392 = vmatprep.subr.mxu0 0.0
      %1393 = vmatpush2.msra.mxu0 0.0
      %1394 = vmatprep.subr.mxu0 0.0
      %1395 = vmatpush2.msra.mxu0 0.0
      %1396 = vmatprep.subr.mxu0 0.0
      %1397 = vmatpush2.msra.mxu0 0.0
      %1398 = vmatprep.subr.mxu0 0.0
      %1399 = vmatpush2.msra.mxu0 0.0
      %1400 = vmatprep.subr.mxu0 0.0
      %1401 = vmatpush2.msra.mxu0 0.0
      %1402 = vmatprep.subr.mxu0 0.0
      %1403 = vmatpush2.msra.mxu0 0.0
      %1404 = vmatprep.subr.mxu0 0.0
      %1405 = vmatpush2.msra.mxu0 0.0
      %1406 = vmatprep.subr.mxu0 0.0
      %1407 = vmatpush2.msra.mxu0 0.0
      %1408 = vmatprep.subr.mxu0 0.0
      %1409 = vmatpush2.msra.mxu0 0.0
      %1410 = vmatprep.subr.mxu0 0.0
      %1411 = vmatpush2.msra.mxu0 0.0
      %1412 = vmatprep.subr.mxu0 0.0
      %1413 = vmatpush2.msra.mxu0 0.0
      %1414 = vmatprep.subr.mxu0 0.0
      %1415 = vmatpush2.msra.mxu0 0.0
      %1416 = vmatprep.subr.mxu0 0.0
      %1417 = vmatpush2.msra.mxu0 0.0
      %1418 = vmatprep.subr.mxu0 0.0
      %1419 = vmatpush2.msra.mxu0 0.0
      %1420 = vmatprep.subr.mxu0 0.0
      %1421 = vmatpush2.msra.mxu0 0.0
      %1422 = vmatprep.subr.mxu0 0.0
      %1423 = vmatpush2.msra.mxu0 0.0
      %1424 = vmatprep.mubr.f32.mxu0 0.0
      %v1425 = vand.u32 %v1019, 4294901760
      %1426 = vmatmul.mubr.f32.gmra.mxu0 %v1425
      %v1427 = vpop.f32.mrf.mxu0
      %v1428 = vadd.f32 %v1345, %v1427
      %v1429 = vpop.f32.mrf.mxu0
      %1430 = vdwg.mxu0
      %1431 = vmatprep.subr.mxu0 0.0
      %1432 = vmatpush1.msra.mxu0 0.0
      %1433 = vmatprep.subr.mxu0 0.0
      %1434 = vmatpush1.msra.mxu0 0.0
      %1435 = vmatprep.subr.mxu0 0.0
      %1436 = vmatpush1.msra.mxu0 0.0
      %1437 = vmatprep.subr.mxu0 0.0
      %1438 = vmatpush1.msra.mxu0 0.0
      %1439 = vmatprep.subr.mxu0 0.0
      %1440 = vmatpush1.msra.mxu0 0.0
      %1441 = vmatprep.subr.mxu0 0.0
      %1442 = vmatpush1.msra.mxu0 0.0
      %1443 = vmatprep.subr.mxu0 0.0
      %1444 = vmatpush1.msra.mxu0 0.0
      %1445 = vmatprep.subr.mxu0 0.0
      %1446 = vmatpush1.msra.mxu0 0.0
      %1447 = vmatprep.subr.mxu0 0.0
      %1448 = vmatpush1.msra.mxu0 0.0
      %1449 = vmatprep.subr.mxu0 0.0
      %1450 = vmatpush1.msra.mxu0 0.0
      %1451 = vmatprep.subr.mxu0 0.0
      %1452 = vmatpush1.msra.mxu0 0.0
      %1453 = vmatprep.subr.mxu0 0.0
      %1454 = vmatpush1.msra.mxu0 0.0
      %1455 = vmatprep.subr.mxu0 0.0
      %v1456 = vand.u32 %v1009, 4294901760
      %1457 = vmatpush1.msra.mxu0 %v1456
      %1458 = vmatprep.subr.mxu0 0.0
      %v1459 = vand.u32 %v1008, 4294901760
      %1460 = vmatpush1.msra.mxu0 %v1459
      %1461 = vmatprep.subr.mxu0 0.0
      %v1462 = vand.u32 %v1007, 4294901760
      %1463 = vmatpush1.msra.mxu0 %v1462
      %1464 = vmatprep.subr.mxu0 0.0
      %v1465 = vand.u32 %v1006, 4294901760
      %1466 = vmatpush1.msra.mxu0 %v1465
      %1467 = vmatprep.subr.mxu0 0.0
      %1468 = vmatpush2.msra.mxu0 0.0
      %1469 = vmatprep.subr.mxu0 0.0
      %1470 = vmatpush2.msra.mxu0 0.0
      %1471 = vmatprep.subr.mxu0 0.0
      %1472 = vmatpush2.msra.mxu0 0.0
      %1473 = vmatprep.subr.mxu0 0.0
      %1474 = vmatpush2.msra.mxu0 0.0
      %1475 = vmatprep.subr.mxu0 0.0
      %1476 = vmatpush2.msra.mxu0 0.0
      %1477 = vmatprep.subr.mxu0 0.0
      %1478 = vmatpush2.msra.mxu0 0.0
      %1479 = vmatprep.subr.mxu0 0.0
      %1480 = vmatpush2.msra.mxu0 0.0
      %1481 = vmatprep.subr.mxu0 0.0
      %1482 = vmatpush2.msra.mxu0 0.0
      %1483 = vmatprep.subr.mxu0 0.0
      %1484 = vmatpush2.msra.mxu0 0.0
      %1485 = vmatprep.subr.mxu0 0.0
      %1486 = vmatpush2.msra.mxu0 0.0
      %1487 = vmatprep.subr.mxu0 0.0
      %1488 = vmatpush2.msra.mxu0 0.0
      %1489 = vmatprep.subr.mxu0 0.0
      %1490 = vmatpush2.msra.mxu0 0.0
      %1491 = vmatprep.subr.mxu0 0.0
      %1492 = vmatpush2.msra.mxu0 0.0
      %1493 = vmatprep.subr.mxu0 0.0
      %1494 = vmatpush2.msra.mxu0 0.0
      %1495 = vmatprep.subr.mxu0 0.0
      %1496 = vmatpush2.msra.mxu0 0.0
      %1497 = vmatprep.subr.mxu0 0.0
      %1498 = vmatpush2.msra.mxu0 0.0
      %1499 = vmatprep.mubr.f32.mxu0 0.0
      %v1500 = vand.u32 %v1019, 4294901760
      %1501 = vmatmul.mubr.f32.gmra.mxu0 %v1500
      %v1502 = vpop.f32.mrf.mxu0
      %v1503 = vadd.f32 %v1428, %v1502
      %v1504 = vpop.f32.mrf.mxu0
      %1505 = vdwg.mxu0
      %1506 = vst [vmem:[%s322] sm:$0xff] %v1503
      %1507 = vst.msk [vmem:[#allocation2] sm:$0xff] %vm339, %v1503
      %p1508 = scmp.lt.s32.totalorder %s24, 7
      %s1509 = scalar_select %p1508, %s24, 7
      %p1510 = scmp.lt.s32.totalorder %s23, 0
      %s1511 = scalar_select %p1510, %s23, 0
      %s1512 = sadd.s32 %s1511, %s1509
      %s1513 = smul.addr %s1512, 8
      %s1514 = scalar_lea.vmem %s7, %s1513
      // Predicated region
      $region53: #{titan_forward_seq.1} parent=47 // pred_check
        %p1515 = pneg %p210
      $region54: #{titan_forward_seq.1} parent=47 // pred_check_branch
        %1517 = sbr.rel (%p1515) target = $region56
      $region55: #{titan_forward_seq.1} parent=47 // pred_region
        _
      $region56: #{titan_forward_seq.1} parent=47 // pred_fallthru
        _
    $region48: #{titan_forward_seq.1} parent=5 // pred_fallthru
      _
    %p1518 = scmp.le.s32.totalorder 2, %s14
    // Predicated region
    $region57: #{titan_forward_seq.1} parent=5 // pred_check
      %p1519 = pneg %p1518
    $region58: #{titan_forward_seq.1} parent=5 // pred_check_branch
      %1521 = sbr.rel (%p1519) target = $region60
    $region59: #{titan_forward_seq.1} parent=5 // pred_region
      %s1522 = ssub.s32 %s14, 2
      // Predicated region
      $region61: #{titan_forward_seq.1} parent=59 // pred_check
        %p1523 = pneg %p216
      $region62: #{titan_forward_seq.1} parent=59 // pred_check_branch
        %1525 = sbr.rel (%p1523) target = $region64
      $region63: #{titan_forward_seq.1} parent=59 // pred_region
        %p1526 = scmp.lt.s32.totalorder %s26, 7
        %s1527 = scalar_select %p1526, %s26, 7
        %p1528 = scmp.lt.s32.totalorder %s25, 0
        %s1529 = scalar_select %p1528, %s25, 0
        %s1530 = sadd.s32 %s1529, %s1527
        %s1531 = smul.addr %s1530, 8
        %s1532 = scalar_lea.vmem %s7, %s1531
      $region64: #{titan_forward_seq.1} parent=59 // pred_fallthru
        _
    $region60: #{titan_forward_seq.1} parent=5 // pred_fallthru
      _
  $region6: #{titan_forward_seq.1} parent=0 // loop_footer
    %s18 = sadd.s32 1, %s14
  $region7: #{titan_forward_seq.1} parent=0 // loop_footer_branch
    %13 = sbr.rel target = $region3
  $region8: #{titan_forward_seq.1} parent=0 // loop_exit
    _

</llo_original>
